<compile_context>
chip_gen: v6e
topology: v6e:2x2x1
jax: 0.10.0
libtpu: 0.0.40
codegen_flags: <defaults>
</compile_context>

<pallas_src>
import jax
import jax.numpy as jnp
from jax.experimental import pallas as pl
from jax.experimental.pallas import tpu as pltpu

C_IN = 4      # input channels
EMBED = 32    # backbone output feature dim
HIDDEN = 32   # head hidden dim
OUT = 16      # head output dim

LANE = 128    # lane-dense padded width for EMBED / HIDDEN / OUT
E_PAD = LANE
H_PAD = LANE
O_PAD = LANE
SUB = 8       # sublane multiple for row padding


def _round_up(n, m):
    return (n + m - 1) // m * m


def _erf(x):
    # Abramowitz & Stegun 7.1.26 rational approximation of erf (|err| < 1.5e-7).
    # Uses only exp / mul / add / compare-select, all with guaranteed Mosaic
    # lowerings (exp -> EUP slot, rest -> VPU).
    a1, a2, a3, a4, a5 = 0.254829592, -0.284496736, 1.421413741, -1.453152027, 1.061405429
    p = 0.3275911
    s = jnp.where(x >= 0.0, 1.0, -1.0)
    ax = x * s
    t = 1.0 / (1.0 + p * ax)
    poly = ((((a5 * t + a4) * t + a3) * t + a2) * t + a1) * t
    return s * (1.0 - poly * jnp.exp(-ax * ax))


def _gelu_exact(x):
    # Exact-erf GELU (PyTorch nn.GELU default), to ~1e-7 absolute accuracy.
    return 0.5 * x * (1.0 + _erf(x * 0.7071067811865476))


# --------------------------- fused forward kernel ---------------------------
def _build_fused_kernel(crop_rows, crop_group):
    """crop_rows:  static list of (row_start, n_rows) per crop in the
                   concatenated feature matrix.
       crop_group: static list mapping crop index -> resolution-group index."""
    n_crops = len(crop_rows)
    n_groups = max(crop_group) + 1

    def kernel(*refs):
        x_refs = refs[:n_crops]                                   # [B_c, C*S_g]
        w_refs = refs[n_crops:n_crops + n_groups]                 # [C*S_g, E_PAD]
        b_bb, w1, b1, w2, b2 = refs[n_crops + n_groups:n_crops + n_groups + 5]
        o_ref = refs[n_crops + n_groups + 5]                      # [N_pad, O_PAD]
        feat = refs[n_crops + n_groups + 6]                       # VMEM scratch

        # Deterministic padded tail rows.
        feat[...] = jnp.zeros_like(feat)

        # Backbone: average pool folded into W_eff -> one MXU matmul per crop.
        # Rows go straight into the VMEM feature slab (no HBM round trip).
        for c in range(n_crops):
            r0, nr = crop_rows[c]
            fc = jnp.dot(x_refs[c][...], w_refs[crop_group[c]][...],
                         preferred_element_type=jnp.float32) + b_bb[...]
            feat[r0:r0 + nr, :] = fc

        # Head: 2-layer MLP on the lane-dense [N_pad, 128] feature slab.
        h = jnp.dot(feat[...], w1[...], preferred_element_type=jnp.float32) + b1[...]
        h = _gelu_exact(h)
        o_ref[...] = jnp.dot(h, w2[...], preferred_element_type=jnp.float32) + b2[...]

    return kernel


# ------------------------- MultiCropWrapper.forward --------------------------
def multi_crop_wrapper_forward(x, params):
    """Same semantics as MultiCropWrapper.forward:
    idx_crops = cumsum(unique_consecutive([inp.shape[-1] for inp in x]).counts);
    backbone per group on concatenated crops; head on concatenated features."""
    if not isinstance(x, (list, tuple)):
        x = [x]

    # --- static consecutive grouping by last-dim resolution -----------------
    crop_group, group_res = [], []
    for inp in x:
        r = int(inp.shape[-1])
        if not group_res or r != group_res[-1]:
            group_res.append(r)
        crop_group.append(len(group_res) - 1)

    # Row layout of the concatenated feature matrix (static).
    crop_rows, row = [], 0
    for inp in x:
        b = int(inp.shape[0])
        crop_rows.append((row, b))
        row += b
    n_total = row
    n_pad = max(_round_up(n_total, SUB), SUB)

    # --- fold the spatial mean into the projection weight, pad to 128 lanes --
    w_bb = params["w_bb"]                                         # [C, EMBED]
    w_effs = []
    for g in range(len(group_res)):
        first = x[crop_group.index(g)]
        S = int(first.shape[-2]) * int(first.shape[-1])           # true per-group S
        w_eff = jnp.repeat(w_bb, S, axis=0) / float(S)            # [C*S, EMBED]
        w_effs.append(jnp.pad(w_eff, ((0, 0), (0, E_PAD - EMBED))))

    b_bb = jnp.pad(params["b_bb"], ((0, 0), (0, E_PAD - EMBED)))
    w1 = jnp.pad(params["w1"], ((0, E_PAD - EMBED), (0, H_PAD - HIDDEN)))
    b1 = jnp.pad(params["b1"], ((0, 0), (0, H_PAD - HIDDEN)))
    w2 = jnp.pad(params["w2"], ((0, H_PAD - HIDDEN), (0, O_PAD - OUT)))
    b2 = jnp.pad(params["b2"], ((0, 0), (0, O_PAD - OUT)))

    # Flatten each crop NCHW -> [B, C*H*W] (free reshape; no concat copies).
    x_flat = [inp.reshape(inp.shape[0], -1) for inp in x]

    kernel = _build_fused_kernel(crop_rows, crop_group)
    in_arrays = x_flat + w_effs + [b_bb, w1, b1, w2, b2]
    in_specs = [
        pl.BlockSpec(a.shape, lambda i, nd=a.ndim: (0,) * nd) for a in in_arrays
    ]

    out = pl.pallas_call(
        kernel,
        out_shape=jax.ShapeDtypeStruct((n_pad, O_PAD), jnp.float32),
        grid=(1,),
        in_specs=in_specs,
        out_specs=pl.BlockSpec((n_pad, O_PAD), lambda i: (0, 0)),
        scratch_shapes=[pltpu.VMEM((n_pad, E_PAD), jnp.float32)],
        compiler_params=pltpu.CompilerParams(
            dimension_semantics=("arbitrary",)),
    )(*in_arrays)

    return out[:n_total, :OUT]


if __name__ == "__main__":
    key = jax.random.PRNGKey(0)
    k_bb, k1, k2, kx_g, kx_l = jax.random.split(key, 5)

    # Deterministic synthetic parameters (no checkpoint loading).
    params = {
        "w_bb": jax.random.normal(k_bb, (C_IN, EMBED), jnp.float32) * 0.1,
        "b_bb": jnp.zeros((1, EMBED), jnp.float32),
        "w1":   jax.random.normal(k1, (EMBED, HIDDEN), jnp.float32) * 0.1,
        "b1":   jnp.zeros((1, HIDDEN), jnp.float32),
        "w2":   jax.random.normal(k2, (HIDDEN, OUT), jnp.float32) * 0.1,
        "b2":   jnp.zeros((1, OUT), jnp.float32),
    }

    # Multi-crop list: 2 "global" crops @ 16x16 and 3 "local" crops @ 8x8, NCHW.
    globals_ = [
        jax.random.normal(jax.random.fold_in(kx_g, i), (2, C_IN, 16, 16), jnp.float32)
        for i in range(2)
    ]
    locals_ = [
        jax.random.normal(jax.random.fold_in(kx_l, i), (2, C_IN, 8, 8), jnp.float32)
        for i in range(3)
    ]
    crops = globals_ + locals_

    out = multi_crop_wrapper_forward(crops, params)
    out = jax.block_until_ready(out)
    # group1: 2 crops * batch 2 = 4 rows; group2: 3 crops * batch 2 = 6 rows
    assert out.shape == (10, OUT) and out.dtype == jnp.float32

    # Pure-JAX reference (mirrors the PyTorch forward with the same synthetic
    # backbone/head; exact-erf GELU as in nn.GELU default).
    def ref_forward(xs, p):
        res = [int(i.shape[-1]) for i in xs]
        ends, s = [], 0
        for i in range(1, len(res) + 1):
            if i == len(res) or res[i] != res[s]:
                ends.append(i)
                s = i
        feats, start = [], 0
        for e in ends:
            xg = jnp.concatenate(xs[start:e], axis=0)
            pooled = xg.reshape(xg.shape[0], xg.shape[1], -1).mean(-1)
            feats.append(pooled @ p["w_bb"] + p["b_bb"])
            start = e
        f = jnp.concatenate(feats, axis=0)
        h = jax.nn.gelu(f @ p["w1"] + p["b1"], approximate=False)
        return h @ p["w2"] + p["b2"]

    ref = ref_forward(crops, params)
    assert float(jnp.max(jnp.abs(out - ref))) < 1e-4
    print("KERNEL_OK")
</pallas_src>

<mosaic_0001>
module attributes {stable_mosaic.version = 11 : i64} {
  func.func @kernel(%arg0: i32, %arg1: memref<2x1024xf32, #tpu.memory_space<vmem>>, %arg2: memref<2x1024xf32, #tpu.memory_space<vmem>>, %arg3: memref<2x256xf32, #tpu.memory_space<vmem>>, %arg4: memref<2x256xf32, #tpu.memory_space<vmem>>, %arg5: memref<2x256xf32, #tpu.memory_space<vmem>>, %arg6: memref<1024x128xf32, #tpu.memory_space<vmem>>, %arg7: memref<256x128xf32, #tpu.memory_space<vmem>>, %arg8: memref<1x128xf32, #tpu.memory_space<vmem>>, %arg9: memref<128x128xf32, #tpu.memory_space<vmem>>, %arg10: memref<1x128xf32, #tpu.memory_space<vmem>>, %arg11: memref<128x128xf32, #tpu.memory_space<vmem>>, %arg12: memref<1x128xf32, #tpu.memory_space<vmem>>, %arg13: memref<16x128xf32, #tpu.memory_space<vmem>>, %arg14: memref<16x128xf32, #tpu.memory_space<vmem>>) attributes {dimension_semantics = [#tpu.dimension_semantics<arbitrary>], iteration_bounds = array<i64: 1>, scalar_prefetch = 0 : i64, scratch_operands = 1 : i64, tpu.core_type = #tpu.core_type<tc>, window_params = [{pipeline_mode = #tpu.pipeline_mode<synchronous>, transform_indices = @transform_0, window_bounds = array<i64: 2, 1024>}, {pipeline_mode = #tpu.pipeline_mode<synchronous>, transform_indices = @transform_1, window_bounds = array<i64: 2, 1024>}, {pipeline_mode = #tpu.pipeline_mode<synchronous>, transform_indices = @transform_2, window_bounds = array<i64: 2, 256>}, {pipeline_mode = #tpu.pipeline_mode<synchronous>, transform_indices = @transform_3, window_bounds = array<i64: 2, 256>}, {pipeline_mode = #tpu.pipeline_mode<synchronous>, transform_indices = @transform_4, window_bounds = array<i64: 2, 256>}, {pipeline_mode = #tpu.pipeline_mode<synchronous>, transform_indices = @transform_5, window_bounds = array<i64: 1024, 128>}, {pipeline_mode = #tpu.pipeline_mode<synchronous>, transform_indices = @transform_6, window_bounds = array<i64: 256, 128>}, {pipeline_mode = #tpu.pipeline_mode<synchronous>, transform_indices = @transform_7, window_bounds = array<i64: 1, 128>}, {pipeline_mode = #tpu.pipeline_mode<synchronous>, transform_indices = @transform_8, window_bounds = array<i64: 128, 128>}, {pipeline_mode = #tpu.pipeline_mode<synchronous>, transform_indices = @transform_9, window_bounds = array<i64: 1, 128>}, {pipeline_mode = #tpu.pipeline_mode<synchronous>, transform_indices = @transform_10, window_bounds = array<i64: 128, 128>}, {pipeline_mode = #tpu.pipeline_mode<synchronous>, transform_indices = @transform_11, window_bounds = array<i64: 1, 128>}, {pipeline_mode = #tpu.pipeline_mode<synchronous>, transform_indices = @transform_12, window_bounds = array<i64: 16, 128>}]} {
    %cst = arith.constant 0.000000e+00 : f32
    %0 = vector.broadcast %cst : f32 to vector<16x128xf32>
    %c0 = arith.constant 0 : index
    %c0_0 = arith.constant 0 : index
    %1 = vector.load %arg14[%c0, %c0_0] : memref<16x128xf32, #tpu.memory_space<vmem>>, vector<16x128xf32>
    tpu.vector_store %arg14[%c0, %c0_0], %0 {strides = array<i32>} : memref<16x128xf32, #tpu.memory_space<vmem>>, vector<16x128xf32>,
    %c0_1 = arith.constant 0 : index
    %c0_2 = arith.constant 0 : index
    %2 = vector.load %arg1[%c0_1, %c0_2] : memref<2x1024xf32, #tpu.memory_space<vmem>>, vector<2x1024xf32>
    %c0_3 = arith.constant 0 : index
    %c0_4 = arith.constant 0 : index
    %3 = vector.load %arg6[%c0_3, %c0_4] : memref<1024x128xf32, #tpu.memory_space<vmem>>, vector<1024x128xf32>
    %cst_5 = arith.constant dense<0.000000e+00> : vector<2x128xf32>
    %4 = tpu.matmul %2, %3, %cst_5 {dimension_numbers = #tpu.dot_dimension_numbers<[1], [0], [0], [1], [0, 0, 1, 1], [], []>} : vector<2x1024xf32>, vector<1024x128xf32>, vector<2x128xf32> -> vector<2x128xf32>
    %c0_6 = arith.constant 0 : index
    %c0_7 = arith.constant 0 : index
    %5 = vector.load %arg8[%c0_6, %c0_7] : memref<1x128xf32, #tpu.memory_space<vmem>>, vector<1x128xf32>
    %6 = vector.broadcast %5 : vector<1x128xf32> to vector<2x128xf32>
    %7 = arith.addf %4, %6 : vector<2x128xf32>
    %c0_8 = arith.constant 0 : index
    %c0_9 = arith.constant 0 : index
    %8 = vector.load %arg14[%c0_8, %c0_9] : memref<16x128xf32, #tpu.memory_space<vmem>>, vector<2x128xf32>
    tpu.vector_store %arg14[%c0_8, %c0_9], %7 {strides = array<i32>} : memref<16x128xf32, #tpu.memory_space<vmem>>, vector<2x128xf32>,
    %c0_10 = arith.constant 0 : index
    %c0_11 = arith.constant 0 : index
    %9 = vector.load %arg2[%c0_10, %c0_11] : memref<2x1024xf32, #tpu.memory_space<vmem>>, vector<2x1024xf32>
    %c0_12 = arith.constant 0 : index
    %c0_13 = arith.constant 0 : index
    %10 = vector.load %arg6[%c0_12, %c0_13] : memref<1024x128xf32, #tpu.memory_space<vmem>>, vector<1024x128xf32>
    %cst_14 = arith.constant dense<0.000000e+00> : vector<2x128xf32>
    %11 = tpu.matmul %9, %10, %cst_14 {dimension_numbers = #tpu.dot_dimension_numbers<[1], [0], [0], [1], [0, 0, 1, 1], [], []>} : vector<2x1024xf32>, vector<1024x128xf32>, vector<2x128xf32> -> vector<2x128xf32>
    %c0_15 = arith.constant 0 : index
    %c0_16 = arith.constant 0 : index
    %12 = vector.load %arg8[%c0_15, %c0_16] : memref<1x128xf32, #tpu.memory_space<vmem>>, vector<1x128xf32>
    %13 = vector.broadcast %12 : vector<1x128xf32> to vector<2x128xf32>
    %14 = arith.addf %11, %13 : vector<2x128xf32>
    %c2 = arith.constant 2 : index
    %c0_17 = arith.constant 0 : index
    %15 = vector.load %arg14[%c2, %c0_17] : memref<16x128xf32, #tpu.memory_space<vmem>>, vector<2x128xf32>
    tpu.vector_store %arg14[%c2, %c0_17], %14 {strides = array<i32>} : memref<16x128xf32, #tpu.memory_space<vmem>>, vector<2x128xf32>,
    %c0_18 = arith.constant 0 : index
    %c0_19 = arith.constant 0 : index
    %16 = vector.load %arg3[%c0_18, %c0_19] : memref<2x256xf32, #tpu.memory_space<vmem>>, vector<2x256xf32>
    %c0_20 = arith.constant 0 : index
    %c0_21 = arith.constant 0 : index
    %17 = vector.load %arg7[%c0_20, %c0_21] : memref<256x128xf32, #tpu.memory_space<vmem>>, vector<256x128xf32>
    %cst_22 = arith.constant dense<0.000000e+00> : vector<2x128xf32>
    %18 = tpu.matmul %16, %17, %cst_22 {dimension_numbers = #tpu.dot_dimension_numbers<[1], [0], [0], [1], [0, 0, 1, 1], [], []>} : vector<2x256xf32>, vector<256x128xf32>, vector<2x128xf32> -> vector<2x128xf32>
    %c0_23 = arith.constant 0 : index
    %c0_24 = arith.constant 0 : index
    %19 = vector.load %arg8[%c0_23, %c0_24] : memref<1x128xf32, #tpu.memory_space<vmem>>, vector<1x128xf32>
    %20 = vector.broadcast %19 : vector<1x128xf32> to vector<2x128xf32>
    %21 = arith.addf %18, %20 : vector<2x128xf32>
    %c4 = arith.constant 4 : index
    %c0_25 = arith.constant 0 : index
    %22 = vector.load %arg14[%c4, %c0_25] : memref<16x128xf32, #tpu.memory_space<vmem>>, vector<2x128xf32>
    tpu.vector_store %arg14[%c4, %c0_25], %21 {strides = array<i32>} : memref<16x128xf32, #tpu.memory_space<vmem>>, vector<2x128xf32>,
    %c0_26 = arith.constant 0 : index
    %c0_27 = arith.constant 0 : index
    %23 = vector.load %arg4[%c0_26, %c0_27] : memref<2x256xf32, #tpu.memory_space<vmem>>, vector<2x256xf32>
    %c0_28 = arith.constant 0 : index
    %c0_29 = arith.constant 0 : index
    %24 = vector.load %arg7[%c0_28, %c0_29] : memref<256x128xf32, #tpu.memory_space<vmem>>, vector<256x128xf32>
    %cst_30 = arith.constant dense<0.000000e+00> : vector<2x128xf32>
    %25 = tpu.matmul %23, %24, %cst_30 {dimension_numbers = #tpu.dot_dimension_numbers<[1], [0], [0], [1], [0, 0, 1, 1], [], []>} : vector<2x256xf32>, vector<256x128xf32>, vector<2x128xf32> -> vector<2x128xf32>
    %c0_31 = arith.constant 0 : index
    %c0_32 = arith.constant 0 : index
    %26 = vector.load %arg8[%c0_31, %c0_32] : memref<1x128xf32, #tpu.memory_space<vmem>>, vector<1x128xf32>
    %27 = vector.broadcast %26 : vector<1x128xf32> to vector<2x128xf32>
    %28 = arith.addf %25, %27 : vector<2x128xf32>
    %c6 = arith.constant 6 : index
    %c0_33 = arith.constant 0 : index
    %29 = vector.load %arg14[%c6, %c0_33] : memref<16x128xf32, #tpu.memory_space<vmem>>, vector<2x128xf32>
    tpu.vector_store %arg14[%c6, %c0_33], %28 {strides = array<i32>} : memref<16x128xf32, #tpu.memory_space<vmem>>, vector<2x128xf32>,
    %c0_34 = arith.constant 0 : index
    %c0_35 = arith.constant 0 : index
    %30 = vector.load %arg5[%c0_34, %c0_35] : memref<2x256xf32, #tpu.memory_space<vmem>>, vector<2x256xf32>
    %c0_36 = arith.constant 0 : index
    %c0_37 = arith.constant 0 : index
    %31 = vector.load %arg7[%c0_36, %c0_37] : memref<256x128xf32, #tpu.memory_space<vmem>>, vector<256x128xf32>
    %cst_38 = arith.constant dense<0.000000e+00> : vector<2x128xf32>
    %32 = tpu.matmul %30, %31, %cst_38 {dimension_numbers = #tpu.dot_dimension_numbers<[1], [0], [0], [1], [0, 0, 1, 1], [], []>} : vector<2x256xf32>, vector<256x128xf32>, vector<2x128xf32> -> vector<2x128xf32>
    %c0_39 = arith.constant 0 : index
    %c0_40 = arith.constant 0 : index
    %33 = vector.load %arg8[%c0_39, %c0_40] : memref<1x128xf32, #tpu.memory_space<vmem>>, vector<1x128xf32>
    %34 = vector.broadcast %33 : vector<1x128xf32> to vector<2x128xf32>
    %35 = arith.addf %32, %34 : vector<2x128xf32>
    %c8 = arith.constant 8 : index
    %c0_41 = arith.constant 0 : index
    %36 = vector.load %arg14[%c8, %c0_41] : memref<16x128xf32, #tpu.memory_space<vmem>>, vector<2x128xf32>
    tpu.vector_store %arg14[%c8, %c0_41], %35 {strides = array<i32>} : memref<16x128xf32, #tpu.memory_space<vmem>>, vector<2x128xf32>,
    %c0_42 = arith.constant 0 : index
    %c0_43 = arith.constant 0 : index
    %37 = vector.load %arg14[%c0_42, %c0_43] : memref<16x128xf32, #tpu.memory_space<vmem>>, vector<16x128xf32>
    %c0_44 = arith.constant 0 : index
    %c0_45 = arith.constant 0 : index
    %38 = vector.load %arg9[%c0_44, %c0_45] : memref<128x128xf32, #tpu.memory_space<vmem>>, vector<128x128xf32>
    %cst_46 = arith.constant dense<0.000000e+00> : vector<16x128xf32>
    %39 = tpu.matmul %37, %38, %cst_46 {dimension_numbers = #tpu.dot_dimension_numbers<[1], [0], [0], [1], [0, 0, 1, 1], [], []>} : vector<16x128xf32>, vector<128x128xf32>, vector<16x128xf32> -> vector<16x128xf32>
    %c0_47 = arith.constant 0 : index
    %c0_48 = arith.constant 0 : index
    %40 = vector.load %arg10[%c0_47, %c0_48] : memref<1x128xf32, #tpu.memory_space<vmem>>, vector<1x128xf32>
    %41 = vector.broadcast %40 : vector<1x128xf32> to vector<16x128xf32>
    %42 = arith.addf %39, %41 : vector<16x128xf32>
    %cst_49 = arith.constant 5.000000e-01 : f32
    %43 = vector.broadcast %cst_49 : f32 to vector<16x128xf32>
    %44 = arith.mulf %43, %42 : vector<16x128xf32>
    %cst_50 = arith.constant 0.707106769 : f32
    %45 = vector.broadcast %cst_50 : f32 to vector<16x128xf32>
    %46 = arith.mulf %42, %45 : vector<16x128xf32>
    %cst_51 = arith.constant 0.000000e+00 : f32
    %47 = vector.broadcast %cst_51 : f32 to vector<16x128xf32>
    %48 = arith.cmpf oge, %46, %47 : vector<16x128xf32>
    %cst_52 = arith.constant 1.000000e+00 : f32
    %cst_53 = arith.constant -1.000000e+00 : f32
    %49 = vector.broadcast %cst_52 : f32 to vector<16x128xf32>
    %50 = vector.broadcast %cst_53 : f32 to vector<16x128xf32>
    %51 = arith.select %48, %49, %50 : vector<16x128xi1>, vector<16x128xf32>
    %52 = arith.mulf %46, %51 : vector<16x128xf32>
    %cst_54 = arith.constant 0.327591091 : f32
    %53 = vector.broadcast %cst_54 : f32 to vector<16x128xf32>
    %54 = arith.mulf %53, %52 : vector<16x128xf32>
    %cst_55 = arith.constant 1.000000e+00 : f32
    %55 = vector.broadcast %cst_55 : f32 to vector<16x128xf32>
    %56 = arith.addf %55, %54 : vector<16x128xf32>
    %cst_56 = arith.constant 1.000000e+00 : f32
    %57 = vector.broadcast %cst_56 : f32 to vector<16x128xf32>
    %58 = arith.divf %57, %56 : vector<16x128xf32>
    %cst_57 = arith.constant 1.06140542 : f32
    %59 = vector.broadcast %cst_57 : f32 to vector<16x128xf32>
    %60 = arith.mulf %59, %58 : vector<16x128xf32>
    %cst_58 = arith.constant -1.45315206 : f32
    %61 = vector.broadcast %cst_58 : f32 to vector<16x128xf32>
    %62 = arith.addf %60, %61 : vector<16x128xf32>
    %63 = arith.mulf %62, %58 : vector<16x128xf32>
    %cst_59 = arith.constant 1.42141378 : f32
    %64 = vector.broadcast %cst_59 : f32 to vector<16x128xf32>
    %65 = arith.addf %63, %64 : vector<16x128xf32>
    %66 = arith.mulf %65, %58 : vector<16x128xf32>
    %cst_60 = arith.constant -0.284496725 : f32
    %67 = vector.broadcast %cst_60 : f32 to vector<16x128xf32>
    %68 = arith.addf %66, %67 : vector<16x128xf32>
    %69 = arith.mulf %68, %58 : vector<16x128xf32>
    %cst_61 = arith.constant 0.254829586 : f32
    %70 = vector.broadcast %cst_61 : f32 to vector<16x128xf32>
    %71 = arith.addf %69, %70 : vector<16x128xf32>
    %72 = arith.mulf %71, %58 : vector<16x128xf32>
    %cst_62 = arith.constant 0.000000e+00 : f32
    %73 = vector.broadcast %cst_62 : f32 to vector<16x128xf32>
    %74 = arith.subf %73, %52 : vector<16x128xf32>
    %75 = arith.mulf %74, %52 : vector<16x128xf32>
    %76 = math.exp %75 : vector<16x128xf32>
    %77 = arith.mulf %72, %76 : vector<16x128xf32>
    %cst_63 = arith.constant 1.000000e+00 : f32
    %78 = vector.broadcast %cst_63 : f32 to vector<16x128xf32>
    %79 = arith.subf %78, %77 : vector<16x128xf32>
    %80 = arith.mulf %51, %79 : vector<16x128xf32>
    %cst_64 = arith.constant 1.000000e+00 : f32
    %81 = vector.broadcast %cst_64 : f32 to vector<16x128xf32>
    %82 = arith.addf %81, %80 : vector<16x128xf32>
    %83 = arith.mulf %44, %82 : vector<16x128xf32>
    %c0_65 = arith.constant 0 : index
    %c0_66 = arith.constant 0 : index
    %84 = vector.load %arg11[%c0_65, %c0_66] : memref<128x128xf32, #tpu.memory_space<vmem>>, vector<128x128xf32>
    %cst_67 = arith.constant dense<0.000000e+00> : vector<16x128xf32>
    %85 = tpu.matmul %83, %84, %cst_67 {dimension_numbers = #tpu.dot_dimension_numbers<[1], [0], [0], [1], [0, 0, 1, 1], [], []>} : vector<16x128xf32>, vector<128x128xf32>, vector<16x128xf32> -> vector<16x128xf32>
    %c0_68 = arith.constant 0 : index
    %c0_69 = arith.constant 0 : index
    %86 = vector.load %arg12[%c0_68, %c0_69] : memref<1x128xf32, #tpu.memory_space<vmem>>, vector<1x128xf32>
    %87 = vector.broadcast %86 : vector<1x128xf32> to vector<16x128xf32>
    %88 = arith.addf %85, %87 : vector<16x128xf32>
    %c0_70 = arith.constant 0 : index
    %c0_71 = arith.constant 0 : index
    %89 = vector.load %arg13[%c0_70, %c0_71] : memref<16x128xf32, #tpu.memory_space<vmem>>, vector<16x128xf32>
    tpu.vector_store %arg13[%c0_70, %c0_71], %88 {strides = array<i32>} : memref<16x128xf32, #tpu.memory_space<vmem>>, vector<16x128xf32>,
    return
  }
  func.func @transform_0(%arg0: i32) -> (i32, i32) {
    %c0_i32 = arith.constant 0 : i32
    %c0_i32_0 = arith.constant 0 : i32
    %c0_i32_1 = arith.constant 0 : i32
    return %c0_i32, %c0_i32_0 : i32, i32
  }
  func.func @transform_1(%arg0: i32) -> (i32, i32) {
    %c0_i32 = arith.constant 0 : i32
    %c0_i32_0 = arith.constant 0 : i32
    %c0_i32_1 = arith.constant 0 : i32
    return %c0_i32, %c0_i32_0 : i32, i32
  }
  func.func @transform_2(%arg0: i32) -> (i32, i32) {
    %c0_i32 = arith.constant 0 : i32
    %c0_i32_0 = arith.constant 0 : i32
    %c0_i32_1 = arith.constant 0 : i32
    return %c0_i32, %c0_i32_0 : i32, i32
  }
  func.func @transform_3(%arg0: i32) -> (i32, i32) {
    %c0_i32 = arith.constant 0 : i32
    %c0_i32_0 = arith.constant 0 : i32
    %c0_i32_1 = arith.constant 0 : i32
    return %c0_i32, %c0_i32_0 : i32, i32
  }
  func.func @transform_4(%arg0: i32) -> (i32, i32) {
    %c0_i32 = arith.constant 0 : i32
    %c0_i32_0 = arith.constant 0 : i32
    %c0_i32_1 = arith.constant 0 : i32
    return %c0_i32, %c0_i32_0 : i32, i32
  }
  func.func @transform_5(%arg0: i32) -> (i32, i32) {
    %c0_i32 = arith.constant 0 : i32
    %c0_i32_0 = arith.constant 0 : i32
    %c0_i32_1 = arith.constant 0 : i32
    return %c0_i32, %c0_i32_0 : i32, i32
  }
  func.func @transform_6(%arg0: i32) -> (i32, i32) {
    %c0_i32 = arith.constant 0 : i32
    %c0_i32_0 = arith.constant 0 : i32
    %c0_i32_1 = arith.constant 0 : i32
    return %c0_i32, %c0_i32_0 : i32, i32
  }
  func.func @transform_7(%arg0: i32) -> (i32, i32) {
    %c0_i32 = arith.constant 0 : i32
    %c0_i32_0 = arith.constant 0 : i32
    %c0_i32_1 = arith.constant 0 : i32
    return %c0_i32, %c0_i32_0 : i32, i32
  }
  func.func @transform_8(%arg0: i32) -> (i32, i32) {
    %c0_i32 = arith.constant 0 : i32
    %c0_i32_0 = arith.constant 0 : i32
    %c0_i32_1 = arith.constant 0 : i32
    return %c0_i32, %c0_i32_0 : i32, i32
  }
  func.func @transform_9(%arg0: i32) -> (i32, i32) {
    %c0_i32 = arith.constant 0 : i32
    %c0_i32_0 = arith.constant 0 : i32
    %c0_i32_1 = arith.constant 0 : i32
    return %c0_i32, %c0_i32_0 : i32, i32
  }
  func.func @transform_10(%arg0: i32) -> (i32, i32) {
    %c0_i32 = arith.constant 0 : i32
    %c0_i32_0 = arith.constant 0 : i32
    %c0_i32_1 = arith.constant 0 : i32
    return %c0_i32, %c0_i32_0 : i32, i32
  }
  func.func @transform_11(%arg0: i32) -> (i32, i32) {
    %c0_i32 = arith.constant 0 : i32
    %c0_i32_0 = arith.constant 0 : i32
    %c0_i32_1 = arith.constant 0 : i32
    return %c0_i32, %c0_i32_0 : i32, i32
  }
  func.func @transform_12(%arg0: i32) -> (i32, i32) {
    %c0_i32 = arith.constant 0 : i32
    %c0_i32_0 = arith.constant 0 : i32
    %c0_i32_1 = arith.constant 0 : i32
    return %c0_i32, %c0_i32_0 : i32, i32
  }
}

</mosaic_0001>

<llo_original>
// kernel: tpu_custom_call.1
$region0: #{tpu_custom_call.1}
  #allocation0 [shape = 'u32[]', space=smem, size = 0x4, offset = 0x4, fixed_abs, tag = 'smem constant byte address 0x4 - core index']
  #allocation1 [shape = 'u32[144,128]{1,0:T(1,128)}', space=vmem, size = 0x12000, scoped, tag = 'internal scratch']
  #allocation2 [shape = 'f32[16,128]{1,0:T(8,128)}', space=vmem, size = 0x2000, scoped, tag = 'scratch operand']
  %s0 = inlined_call_operand.hbm [shape: f32[2,1024], index: 0, kind: input, shape index: {}]
  %s1 = inlined_call_operand.hbm [shape: f32[2,1024], index: 1, kind: input, shape index: {}]
  %s2 = inlined_call_operand.hbm [shape: f32[2,256], index: 2, kind: input, shape index: {}]
  %s3 = inlined_call_operand.vmem [shape: f32[2,256], index: 3, kind: input, shape index: {}]
  %s4 = inlined_call_operand.hbm [shape: f32[2,256], index: 4, kind: input, shape index: {}]
  %s5 = inlined_call_operand.hbm [shape: f32[1024,128], index: 5, kind: input, shape index: {}]
  %s6 = inlined_call_operand.hbm [shape: f32[256,128], index: 6, kind: input, shape index: {}]
  %s7 = inlined_call_operand.vmem [shape: f32[1,128], index: 7, kind: input, shape index: {}]
  %s8 = inlined_call_operand.hbm [shape: f32[128,128], index: 8, kind: input, shape index: {}]
  %s9 = inlined_call_operand.vmem [shape: f32[1,128], index: 9, kind: input, shape index: {}]
  %s10 = inlined_call_operand.hbm [shape: f32[128,128], index: 10, kind: input, shape index: {}]
  %s11 = inlined_call_operand.vmem [shape: f32[1,128], index: 11, kind: input, shape index: {}]
  %s12 = inlined_call_operand.hbm [shape: f32[16,128], index: 12, kind: output, shape index: {}]
  %s13 = sld [smem:[#allocation0]]
  $region90: #{tpu_custom_call.1} parent=0
    _
  %s15 = ssub.s32 1, %s13
  %s16 = scalar_select 0, %s15, %s13
  $region1: #{tpu_custom_call.1} parent=0
    #allocation3 [shape = 'u8[8192]{0}', space=vmem, size = 0x2000, scoped, tag = 'input window, operand 0, single buffered']
    #allocation4 [shape = 's32[1]{0}', space=sflag, size = 0x4, scoped, tag = 'scoped memory for tpu_custom_call.1']
    #allocation5 [shape = 's32[1]{0}', space=sflag, size = 0x4, scoped, tag = 'scoped memory for tpu_custom_call.1']
    #allocation6 [shape = 'u8[8192]{0}', space=vmem, size = 0x2000, scoped, tag = 'input window, operand 1, single buffered']
    #allocation7 [shape = 's32[1]{0}', space=sflag, size = 0x4, scoped, tag = 'scoped memory for tpu_custom_call.1']
    #allocation8 [shape = 'u8[2048]{0}', space=vmem, size = 0x800, scoped, tag = 'input window, operand 2, single buffered']
    #allocation9 [shape = 'u8[2048]{0}', space=vmem, size = 0x800, scoped, tag = 'input window, operand 4, single buffered']
    #allocation10 [shape = 's32[1]{0}', space=sflag, size = 0x4, scoped, tag = 'scoped memory for tpu_custom_call.1']
    #allocation11 [shape = 'u8[524288]{0}', space=vmem, size = 0x80000, scoped, tag = 'input window, operand 5, single buffered']
    #allocation12 [shape = 'u8[131072]{0}', space=vmem, size = 0x20000, scoped, tag = 'input window, operand 6, single buffered']
    #allocation13 [shape = 's32[1]{0}', space=sflag, size = 0x4, scoped, tag = 'scoped memory for tpu_custom_call.1']
    #allocation14 [shape = 'u8[65536]{0}', space=vmem, size = 0x10000, scoped, tag = 'input window, operand 8, single buffered']
    #allocation15 [shape = 'u8[65536]{0}', space=vmem, size = 0x10000, scoped, tag = 'input window, operand 10, single buffered']
    #allocation16 [shape = 's32[1]{0}', space=sflag, size = 0x4, scoped, tag = 'scoped memory for tpu_custom_call.1']
    #allocation17 [shape = 'u8[8192]{0}', space=vmem, size = 0x2000, scoped, tag = 'output window, operand 0, single buffered']
    %17 = vsyncpa [#allocation4], 0
    %18 = vsyncpa [#allocation7], 0
    %19 = vsyncpa [#allocation10], 0
    %20 = vsyncpa [#allocation13], 0
    %21 = vsyncpa [#allocation16], 0
    %22 = vsyncpa [#allocation5], 0
    // Predicated region
    $region2: #{tpu_custom_call.1} parent=1 // pred_check
      _
    $region3: #{tpu_custom_call.1} parent=1 // pred_check_branch
      %24 = sbr.rel (0) target = $region5
    $region4: #{tpu_custom_call.1} parent=1 // pred_region
      %s26 = ssub.s32 256, 256
      %27 = vsyncadd [#allocation4], %s26
      %s29 = sshll.u32 [#allocation3], 4
      %s30 = int_to_ptr.vmem [resolvable:$true] %s29
      %32 = dma.hbm_to_vmem [thread:$0]  %s0, 256, %s30, [#allocation4]
    $region5: #{tpu_custom_call.1} parent=1 // pred_fallthru
      _
    // Predicated region
    $region6: #{tpu_custom_call.1} parent=1 // pred_check
      _
    $region7: #{tpu_custom_call.1} parent=1 // pred_check_branch
      %34 = sbr.rel (0) target = $region9
    $region8: #{tpu_custom_call.1} parent=1 // pred_region
      %s36 = ssub.s32 256, 256
      %37 = vsyncadd [#allocation7], %s36
      %s39 = sshll.u32 [#allocation6], 4
      %s40 = int_to_ptr.vmem [resolvable:$true] %s39
      %42 = dma.hbm_to_vmem [thread:$0]  %s1, 256, %s40, [#allocation7]
    $region9: #{tpu_custom_call.1} parent=1 // pred_fallthru
      _
    // Predicated region
    $region10: #{tpu_custom_call.1} parent=1 // pred_check
      _
    $region11: #{tpu_custom_call.1} parent=1 // pred_check_branch
      %44 = sbr.rel (0) target = $region13
    $region12: #{tpu_custom_call.1} parent=1 // pred_region
      %s46 = ssub.s32 64, 64
      %47 = vsyncadd [#allocation7], %s46
      %s49 = sshll.u32 [#allocation8], 4
      %s50 = int_to_ptr.vmem [resolvable:$true] %s49
      %52 = dma.hbm_to_vmem [thread:$0]  %s2, 64, %s50, [#allocation7]
    $region13: #{tpu_custom_call.1} parent=1 // pred_fallthru
      _
    // Predicated region
    $region14: #{tpu_custom_call.1} parent=1 // pred_check
      _
    $region15: #{tpu_custom_call.1} parent=1 // pred_check_branch
      %54 = sbr.rel (0) target = $region17
    $region16: #{tpu_custom_call.1} parent=1 // pred_region
      _
    $region17: #{tpu_custom_call.1} parent=1 // pred_fallthru
      _
    // Predicated region
    $region18: #{tpu_custom_call.1} parent=1 // pred_check
      _
    $region19: #{tpu_custom_call.1} parent=1 // pred_check_branch
      %56 = sbr.rel (0) target = $region21
    $region20: #{tpu_custom_call.1} parent=1 // pred_region
      %s58 = ssub.s32 64, 64
      %59 = vsyncadd [#allocation10], %s58
      %s61 = sshll.u32 [#allocation9], 4
      %s62 = int_to_ptr.vmem [resolvable:$true] %s61
      %64 = dma.hbm_to_vmem [thread:$0]  %s4, 64, %s62, [#allocation10]
    $region21: #{tpu_custom_call.1} parent=1 // pred_fallthru
      _
    // Predicated region
    $region22: #{tpu_custom_call.1} parent=1 // pred_check
      _
    $region23: #{tpu_custom_call.1} parent=1 // pred_check_branch
      %66 = sbr.rel (0) target = $region25
    $region24: #{tpu_custom_call.1} parent=1 // pred_region
      %s68 = ssub.s32 16384, 16384
      %69 = vsyncadd [#allocation10], %s68
      %s70 = sshll.u32 [#allocation11], 4
      %s71 = int_to_ptr.vmem [resolvable:$true] %s70
      %76 = dma.hbm_to_vmem [thread:$0]  %s5, 16384, %s71, [#allocation10], 128, 128, 8
    $region25: #{tpu_custom_call.1} parent=1 // pred_fallthru
      _
    // Predicated region
    $region26: #{tpu_custom_call.1} parent=1 // pred_check
      _
    $region27: #{tpu_custom_call.1} parent=1 // pred_check_branch
      %78 = sbr.rel (0) target = $region29
    $region28: #{tpu_custom_call.1} parent=1 // pred_region
      %s80 = ssub.s32 4096, 4096
      %81 = vsyncadd [#allocation13], %s80
      %s82 = sshll.u32 [#allocation12], 4
      %s83 = int_to_ptr.vmem [resolvable:$true] %s82
      %88 = dma.hbm_to_vmem [thread:$0]  %s6, 4096, %s83, [#allocation13], 128, 128, 8
    $region29: #{tpu_custom_call.1} parent=1 // pred_fallthru
      _
    // Predicated region
    $region30: #{tpu_custom_call.1} parent=1 // pred_check
      _
    $region31: #{tpu_custom_call.1} parent=1 // pred_check_branch
      %90 = sbr.rel (0) target = $region33
    $region32: #{tpu_custom_call.1} parent=1 // pred_region
      _
    $region33: #{tpu_custom_call.1} parent=1 // pred_fallthru
      _
    // Predicated region
    $region34: #{tpu_custom_call.1} parent=1 // pred_check
      _
    $region35: #{tpu_custom_call.1} parent=1 // pred_check_branch
      %92 = sbr.rel (0) target = $region37
    $region36: #{tpu_custom_call.1} parent=1 // pred_region
      %s94 = ssub.s32 2048, 2048
      %95 = vsyncadd [#allocation13], %s94
      %s96 = sshll.u32 [#allocation14], 4
      %s97 = int_to_ptr.vmem [resolvable:$true] %s96
      %102 = dma.hbm_to_vmem [thread:$0]  %s8, 2048, %s97, [#allocation13], 128, 128, 8
    $region37: #{tpu_custom_call.1} parent=1 // pred_fallthru
      _
    // Predicated region
    $region38: #{tpu_custom_call.1} parent=1 // pred_check
      _
    $region39: #{tpu_custom_call.1} parent=1 // pred_check_branch
      %104 = sbr.rel (0) target = $region41
    $region40: #{tpu_custom_call.1} parent=1 // pred_region
      _
    $region41: #{tpu_custom_call.1} parent=1 // pred_fallthru
      _
    // Predicated region
    $region42: #{tpu_custom_call.1} parent=1 // pred_check
      _
    $region43: #{tpu_custom_call.1} parent=1 // pred_check_branch
      %106 = sbr.rel (0) target = $region45
    $region44: #{tpu_custom_call.1} parent=1 // pred_region
      %s108 = ssub.s32 2048, 2048
      %109 = vsyncadd [#allocation16], %s108
      %s110 = sshll.u32 [#allocation15], 4
      %s111 = int_to_ptr.vmem [resolvable:$true] %s110
      %116 = dma.hbm_to_vmem [thread:$0]  %s10, 2048, %s111, [#allocation16], 128, 128, 8
    $region45: #{tpu_custom_call.1} parent=1 // pred_fallthru
      _
    // Predicated region
    $region46: #{tpu_custom_call.1} parent=1 // pred_check
      _
    $region47: #{tpu_custom_call.1} parent=1 // pred_check_branch
      %118 = sbr.rel (0) target = $region49
    $region48: #{tpu_custom_call.1} parent=1 // pred_region
      _
    $region49: #{tpu_custom_call.1} parent=1 // pred_fallthru
      _
    // Predicated region
    $region50: #{tpu_custom_call.1} parent=1 // pred_check
      _
    $region51: #{tpu_custom_call.1} parent=1 // pred_check_branch
      %120 = sbr.rel (0) target = $region53
    $region52: #{tpu_custom_call.1} parent=1 // pred_region
      %121 = dma.done [#allocation4], 256
    $region53: #{tpu_custom_call.1} parent=1 // pred_fallthru
      _
    // Predicated region
    $region54: #{tpu_custom_call.1} parent=1 // pred_check
      _
    $region55: #{tpu_custom_call.1} parent=1 // pred_check_branch
      %123 = sbr.rel (0) target = $region57
    $region56: #{tpu_custom_call.1} parent=1 // pred_region
      %124 = dma.done [#allocation7], 256
    $region57: #{tpu_custom_call.1} parent=1 // pred_fallthru
      _
    // Predicated region
    $region58: #{tpu_custom_call.1} parent=1 // pred_check
      _
    $region59: #{tpu_custom_call.1} parent=1 // pred_check_branch
      %126 = sbr.rel (0) target = $region61
    $region60: #{tpu_custom_call.1} parent=1 // pred_region
      %127 = dma.done [#allocation7], 64
    $region61: #{tpu_custom_call.1} parent=1 // pred_fallthru
      _
    // Predicated region
    $region62: #{tpu_custom_call.1} parent=1 // pred_check
      _
    $region63: #{tpu_custom_call.1} parent=1 // pred_check_branch
      %129 = sbr.rel (0) target = $region65
    $region64: #{tpu_custom_call.1} parent=1 // pred_region
      %130 = dma.done [#allocation10], 64
    $region65: #{tpu_custom_call.1} parent=1 // pred_fallthru
      _
    // Predicated region
    $region66: #{tpu_custom_call.1} parent=1 // pred_check
      _
    $region67: #{tpu_custom_call.1} parent=1 // pred_check_branch
      %132 = sbr.rel (0) target = $region69
    $region68: #{tpu_custom_call.1} parent=1 // pred_region
      %133 = dma.done [#allocation10], 16384
    $region69: #{tpu_custom_call.1} parent=1 // pred_fallthru
      _
    // Predicated region
    $region70: #{tpu_custom_call.1} parent=1 // pred_check
      _
    $region71: #{tpu_custom_call.1} parent=1 // pred_check_branch
      %135 = sbr.rel (0) target = $region73
    $region72: #{tpu_custom_call.1} parent=1 // pred_region
      %136 = dma.done [#allocation13], 4096
    $region73: #{tpu_custom_call.1} parent=1 // pred_fallthru
      _
    // Predicated region
    $region74: #{tpu_custom_call.1} parent=1 // pred_check
      _
    $region75: #{tpu_custom_call.1} parent=1 // pred_check_branch
      %138 = sbr.rel (0) target = $region77
    $region76: #{tpu_custom_call.1} parent=1 // pred_region
      %139 = dma.done [#allocation13], 2048
    $region77: #{tpu_custom_call.1} parent=1 // pred_fallthru
      _
    // Predicated region
    $region78: #{tpu_custom_call.1} parent=1 // pred_check
      _
    $region79: #{tpu_custom_call.1} parent=1 // pred_check_branch
      %141 = sbr.rel (0) target = $region81
    $region80: #{tpu_custom_call.1} parent=1 // pred_region
      %142 = dma.done [#allocation16], 2048
    $region81: #{tpu_custom_call.1} parent=1 // pred_fallthru
      _
    %143 = vst [vmem:[#allocation2] sm:$0xff] 0.0
    %144 = vst [vmem:[#allocation2 + $0x8] sm:$0xff] 0.0
    %v145 = vld [vmem:[#allocation3] sm:$0xff]
    %v146 = vld [vmem:[#allocation3 + $0x8] sm:$0xff]
    %v147 = vld [vmem:[#allocation11] sm:$0xff]
    %v148 = vld [vmem:[#allocation11 + $0x8] sm:$0xff]
    %v149 = vld [vmem:[#allocation11 + $0x10] sm:$0xff]
    %v150 = vld [vmem:[#allocation11 + $0x18] sm:$0xff]
    %v151 = vld [vmem:[#allocation11 + $0x20] sm:$0xff]
    %v152 = vld [vmem:[#allocation11 + $0x28] sm:$0xff]
    %v153 = vld [vmem:[#allocation11 + $0x30] sm:$0xff]
    %v154 = vld [vmem:[#allocation11 + $0x38] sm:$0xff]
    %v155 = vld [vmem:[#allocation11 + $0x40] sm:$0xff]
    %v156 = vld [vmem:[#allocation11 + $0x48] sm:$0xff]
    %v157 = vld [vmem:[#allocation11 + $0x50] sm:$0xff]
    %v158 = vld [vmem:[#allocation11 + $0x58] sm:$0xff]
    %v159 = vld [vmem:[#allocation11 + $0x60] sm:$0xff]
    %v160 = vld [vmem:[#allocation11 + $0x68] sm:$0xff]
    %v161 = vld [vmem:[#allocation11 + $0x70] sm:$0xff]
    %v162 = vld [vmem:[#allocation11 + $0x78] sm:$0xff]
    %v163 = vld [vmem:[#allocation11 + $0x80] sm:$0xff]
    %v164 = vld [vmem:[#allocation11 + $0x88] sm:$0xff]
    %v165 = vld [vmem:[#allocation11 + $0x90] sm:$0xff]
    %v166 = vld [vmem:[#allocation11 + $0x98] sm:$0xff]
    %v167 = vld [vmem:[#allocation11 + $0xa0] sm:$0xff]
    %v168 = vld [vmem:[#allocation11 + $0xa8] sm:$0xff]
    %v169 = vld [vmem:[#allocation11 + $0xb0] sm:$0xff]
    %v170 = vld [vmem:[#allocation11 + $0xb8] sm:$0xff]
    %v171 = vld [vmem:[#allocation11 + $0xc0] sm:$0xff]
    %v172 = vld [vmem:[#allocation11 + $0xc8] sm:$0xff]
    %v173 = vld [vmem:[#allocation11 + $0xd0] sm:$0xff]
    %v174 = vld [vmem:[#allocation11 + $0xd8] sm:$0xff]
    %v175 = vld [vmem:[#allocation11 + $0xe0] sm:$0xff]
    %v176 = vld [vmem:[#allocation11 + $0xe8] sm:$0xff]
    %v177 = vld [vmem:[#allocation11 + $0xf0] sm:$0xff]
    %v178 = vld [vmem:[#allocation11 + $0xf8] sm:$0xff]
    %v179 = vld [vmem:[#allocation11 + $0x100] sm:$0xff]
    %v180 = vld [vmem:[#allocation11 + $0x108] sm:$0xff]
    %v181 = vld [vmem:[#allocation11 + $0x110] sm:$0xff]
    %v182 = vld [vmem:[#allocation11 + $0x118] sm:$0xff]
    %v183 = vld [vmem:[#allocation11 + $0x120] sm:$0xff]
    %v184 = vld [vmem:[#allocation11 + $0x128] sm:$0xff]
    %v185 = vld [vmem:[#allocation11 + $0x130] sm:$0xff]
    %v186 = vld [vmem:[#allocation11 + $0x138] sm:$0xff]
    %v187 = vld [vmem:[#allocation11 + $0x140] sm:$0xff]
    %v188 = vld [vmem:[#allocation11 + $0x148] sm:$0xff]
    %v189 = vld [vmem:[#allocation11 + $0x150] sm:$0xff]
    %v190 = vld [vmem:[#allocation11 + $0x158] sm:$0xff]
    %v191 = vld [vmem:[#allocation11 + $0x160] sm:$0xff]
    %v192 = vld [vmem:[#allocation11 + $0x168] sm:$0xff]
    %v193 = vld [vmem:[#allocation11 + $0x170] sm:$0xff]
    %v194 = vld [vmem:[#allocation11 + $0x178] sm:$0xff]
    %v195 = vld [vmem:[#allocation11 + $0x180] sm:$0xff]
    %v196 = vld [vmem:[#allocation11 + $0x188] sm:$0xff]
    %v197 = vld [vmem:[#allocation11 + $0x190] sm:$0xff]
    %v198 = vld [vmem:[#allocation11 + $0x198] sm:$0xff]
    %v199 = vld [vmem:[#allocation11 + $0x1a0] sm:$0xff]
    %v200 = vld [vmem:[#allocation11 + $0x1a8] sm:$0xff]
    %v201 = vld [vmem:[#allocation11 + $0x1b0] sm:$0xff]
    %v202 = vld [vmem:[#allocation11 + $0x1b8] sm:$0xff]
    %v203 = vld [vmem:[#allocation11 + $0x1c0] sm:$0xff]
    %v204 = vld [vmem:[#allocation11 + $0x1c8] sm:$0xff]
    %v205 = vld [vmem:[#allocation11 + $0x1d0] sm:$0xff]
    %v206 = vld [vmem:[#allocation11 + $0x1d8] sm:$0xff]
    %v207 = vld [vmem:[#allocation11 + $0x1e0] sm:$0xff]
    %v208 = vld [vmem:[#allocation11 + $0x1e8] sm:$0xff]
    %v209 = vld [vmem:[#allocation11 + $0x1f0] sm:$0xff]
    %v210 = vld [vmem:[#allocation11 + $0x1f8] sm:$0xff]
    %v211 = vld [vmem:[#allocation11 + $0x200] sm:$0xff]
    %v212 = vld [vmem:[#allocation11 + $0x208] sm:$0xff]
    %v213 = vld [vmem:[#allocation11 + $0x210] sm:$0xff]
    %v214 = vld [vmem:[#allocation11 + $0x218] sm:$0xff]
    %v215 = vld [vmem:[#allocation11 + $0x220] sm:$0xff]
    %v216 = vld [vmem:[#allocation11 + $0x228] sm:$0xff]
    %v217 = vld [vmem:[#allocation11 + $0x230] sm:$0xff]
    %v218 = vld [vmem:[#allocation11 + $0x238] sm:$0xff]
    %v219 = vld [vmem:[#allocation11 + $0x240] sm:$0xff]
    %v220 = vld [vmem:[#allocation11 + $0x248] sm:$0xff]
    %v221 = vld [vmem:[#allocation11 + $0x250] sm:$0xff]
    %v222 = vld [vmem:[#allocation11 + $0x258] sm:$0xff]
    %v223 = vld [vmem:[#allocation11 + $0x260] sm:$0xff]
    %v224 = vld [vmem:[#allocation11 + $0x268] sm:$0xff]
    %v225 = vld [vmem:[#allocation11 + $0x270] sm:$0xff]
    %v226 = vld [vmem:[#allocation11 + $0x278] sm:$0xff]
    %v227 = vld [vmem:[#allocation11 + $0x280] sm:$0xff]
    %v228 = vld [vmem:[#allocation11 + $0x288] sm:$0xff]
    %v229 = vld [vmem:[#allocation11 + $0x290] sm:$0xff]
    %v230 = vld [vmem:[#allocation11 + $0x298] sm:$0xff]
    %v231 = vld [vmem:[#allocation11 + $0x2a0] sm:$0xff]
    %v232 = vld [vmem:[#allocation11 + $0x2a8] sm:$0xff]
    %v233 = vld [vmem:[#allocation11 + $0x2b0] sm:$0xff]
    %v234 = vld [vmem:[#allocation11 + $0x2b8] sm:$0xff]
    %v235 = vld [vmem:[#allocation11 + $0x2c0] sm:$0xff]
    %v236 = vld [vmem:[#allocation11 + $0x2c8] sm:$0xff]
    %v237 = vld [vmem:[#allocation11 + $0x2d0] sm:$0xff]
    %v238 = vld [vmem:[#allocation11 + $0x2d8] sm:$0xff]
    %v239 = vld [vmem:[#allocation11 + $0x2e0] sm:$0xff]
    %v240 = vld [vmem:[#allocation11 + $0x2e8] sm:$0xff]
    %v241 = vld [vmem:[#allocation11 + $0x2f0] sm:$0xff]
    %v242 = vld [vmem:[#allocation11 + $0x2f8] sm:$0xff]
    %v243 = vld [vmem:[#allocation11 + $0x300] sm:$0xff]
    %v244 = vld [vmem:[#allocation11 + $0x308] sm:$0xff]
    %v245 = vld [vmem:[#allocation11 + $0x310] sm:$0xff]
    %v246 = vld [vmem:[#allocation11 + $0x318] sm:$0xff]
    %v247 = vld [vmem:[#allocation11 + $0x320] sm:$0xff]
    %v248 = vld [vmem:[#allocation11 + $0x328] sm:$0xff]
    %v249 = vld [vmem:[#allocation11 + $0x330] sm:$0xff]
    %v250 = vld [vmem:[#allocation11 + $0x338] sm:$0xff]
    %v251 = vld [vmem:[#allocation11 + $0x340] sm:$0xff]
    %v252 = vld [vmem:[#allocation11 + $0x348] sm:$0xff]
    %v253 = vld [vmem:[#allocation11 + $0x350] sm:$0xff]
    %v254 = vld [vmem:[#allocation11 + $0x358] sm:$0xff]
    %v255 = vld [vmem:[#allocation11 + $0x360] sm:$0xff]
    %v256 = vld [vmem:[#allocation11 + $0x368] sm:$0xff]
    %v257 = vld [vmem:[#allocation11 + $0x370] sm:$0xff]
    %v258 = vld [vmem:[#allocation11 + $0x378] sm:$0xff]
    %v259 = vld [vmem:[#allocation11 + $0x380] sm:$0xff]
    %v260 = vld [vmem:[#allocation11 + $0x388] sm:$0xff]
    %v261 = vld [vmem:[#allocation11 + $0x390] sm:$0xff]
    %v262 = vld [vmem:[#allocation11 + $0x398] sm:$0xff]
    %v263 = vld [vmem:[#allocation11 + $0x3a0] sm:$0xff]
    %v264 = vld [vmem:[#allocation11 + $0x3a8] sm:$0xff]
    %v265 = vld [vmem:[#allocation11 + $0x3b0] sm:$0xff]
    %v266 = vld [vmem:[#allocation11 + $0x3b8] sm:$0xff]
    %v267 = vld [vmem:[#allocation11 + $0x3c0] sm:$0xff]
    %v268 = vld [vmem:[#allocation11 + $0x3c8] sm:$0xff]
    %v269 = vld [vmem:[#allocation11 + $0x3d0] sm:$0xff]
    %v270 = vld [vmem:[#allocation11 + $0x3d8] sm:$0xff]
    %v271 = vld [vmem:[#allocation11 + $0x3e0] sm:$0xff]
    %v272 = vld [vmem:[#allocation11 + $0x3e8] sm:$0xff]
    %v273 = vld [vmem:[#allocation11 + $0x3f0] sm:$0xff]
    %v274 = vld [vmem:[#allocation11 + $0x3f8] sm:$0xff]
    %v275 = vld [vmem:[%s7] sm:$0x1]
    %v277 = vlaneseq
    %v278 = vshrl.u32 %v277, 7
    %v279 = vsub.s32 0, %v278
    %v280 = vrot.slane %v275, %v279
    %v284 = vcombine.high %v145, %v145
    %v286 = vunpack.c.l.s4 1983009808
    %v287 = vunpack.c.0.s8 %v286
    %v288 = vlaneseq
    %v289 = vshrl.u32 %v288, 7
    %v290 = vsub.s32 %v287, %v289
    %v291 = vrot.slane %v145, %v290
    %v293 = vunpack.c.l.s4 1983009808
    %v294 = vunpack.c.0.s8 %v293
    %v295 = vlaneseq
    %v296 = vshrl.u32 %v295, 7
    %v297 = vsub.s32 %v294, %v296
    %v298 = vrot.slane %v284, %v297
    %v299 = vcombine.high %v291, %v291
    %v300 = vcombine.high %v298, %v298
    %v301 = vcombine.high %v146, %v146
    %v303 = vunpack.c.l.s4 1983009808
    %v304 = vunpack.c.0.s8 %v303
    %v305 = vlaneseq
    %v306 = vshrl.u32 %v305, 7
    %v307 = vsub.s32 %v304, %v306
    %v308 = vrot.slane %v146, %v307
    %v310 = vunpack.c.l.s4 1983009808
    %v311 = vunpack.c.0.s8 %v310
    %v312 = vlaneseq
    %v313 = vshrl.u32 %v312, 7
    %v314 = vsub.s32 %v311, %v313
    %v315 = vrot.slane %v301, %v314
    %v316 = vcombine.high %v308, %v308
    %v317 = vcombine.high %v315, %v315
    %326 = vmatprep.subr.mxu0 0.0
    %327 = vmatpush1.msra.mxu0 %v162
    %328 = vmatprep.subr.mxu0 0.0
    %329 = vmatpush1.msra.mxu0 %v161
    %330 = vmatprep.subr.mxu0 0.0
    %331 = vmatpush1.msra.mxu0 %v160
    %332 = vmatprep.subr.mxu0 0.0
    %333 = vmatpush1.msra.mxu0 %v159
    %334 = vmatprep.subr.mxu0 0.0
    %335 = vmatpush1.msra.mxu0 %v158
    %336 = vmatprep.subr.mxu0 0.0
    %337 = vmatpush1.msra.mxu0 %v157
    %338 = vmatprep.subr.mxu0 0.0
    %339 = vmatpush1.msra.mxu0 %v156
    %340 = vmatprep.subr.mxu0 0.0
    %341 = vmatpush1.msra.mxu0 %v155
    %342 = vmatprep.subr.mxu0 0.0
    %343 = vmatpush1.msra.mxu0 %v154
    %344 = vmatprep.subr.mxu0 0.0
    %345 = vmatpush1.msra.mxu0 %v153
    %346 = vmatprep.subr.mxu0 0.0
    %347 = vmatpush1.msra.mxu0 %v152
    %348 = vmatprep.subr.mxu0 0.0
    %349 = vmatpush1.msra.mxu0 %v151
    %350 = vmatprep.subr.mxu0 0.0
    %351 = vmatpush1.msra.mxu0 %v150
    %352 = vmatprep.subr.mxu0 0.0
    %353 = vmatpush1.msra.mxu0 %v149
    %354 = vmatprep.subr.mxu0 0.0
    %355 = vmatpush1.msra.mxu0 %v148
    %356 = vmatprep.subr.mxu0 0.0
    %357 = vmatpush1.msra.mxu0 %v147
    %358 = vmatprep.subr.mxu0 0.0
    %359 = vmatpush2.msra.mxu0 %v178
    %360 = vmatprep.subr.mxu0 0.0
    %361 = vmatpush2.msra.mxu0 %v177
    %362 = vmatprep.subr.mxu0 0.0
    %363 = vmatpush2.msra.mxu0 %v176
    %364 = vmatprep.subr.mxu0 0.0
    %365 = vmatpush2.msra.mxu0 %v175
    %366 = vmatprep.subr.mxu0 0.0
    %367 = vmatpush2.msra.mxu0 %v174
    %368 = vmatprep.subr.mxu0 0.0
    %369 = vmatpush2.msra.mxu0 %v173
    %370 = vmatprep.subr.mxu0 0.0
    %371 = vmatpush2.msra.mxu0 %v172
    %372 = vmatprep.subr.mxu0 0.0
    %373 = vmatpush2.msra.mxu0 %v171
    %374 = vmatprep.subr.mxu0 0.0
    %375 = vmatpush2.msra.mxu0 %v170
    %376 = vmatprep.subr.mxu0 0.0
    %377 = vmatpush2.msra.mxu0 %v169
    %378 = vmatprep.subr.mxu0 0.0
    %379 = vmatpush2.msra.mxu0 %v168
    %380 = vmatprep.subr.mxu0 0.0
    %381 = vmatpush2.msra.mxu0 %v167
    %382 = vmatprep.subr.mxu0 0.0
    %383 = vmatpush2.msra.mxu0 %v166
    %384 = vmatprep.subr.mxu0 0.0
    %385 = vmatpush2.msra.mxu0 %v165
    %386 = vmatprep.subr.mxu0 0.0
    %387 = vmatpush2.msra.mxu0 %v164
    %388 = vmatprep.subr.mxu0 0.0
    %389 = vmatpush2.msra.mxu0 %v163
    %390 = vmatprep.mubr.f32.mxu0 %v299
    %391 = vmatmul.mubr.f32.gmra.mxu0 %v291
    %v392 = vpop.f32.mrf.mxu0
    %v393 = vadd.f32 %v280, %v392
    %v394 = vpop.f32.mrf.mxu0
    %395 = vdwg.mxu0
    %396 = vmatprep.subr.mxu0 0.0
    %397 = vmatpush1.msra.mxu0 %v194
    %398 = vmatprep.subr.mxu0 0.0
    %399 = vmatpush1.msra.mxu0 %v193
    %400 = vmatprep.subr.mxu0 0.0
    %401 = vmatpush1.msra.mxu0 %v192
    %402 = vmatprep.subr.mxu0 0.0
    %403 = vmatpush1.msra.mxu0 %v191
    %404 = vmatprep.subr.mxu0 0.0
    %405 = vmatpush1.msra.mxu0 %v190
    %406 = vmatprep.subr.mxu0 0.0
    %407 = vmatpush1.msra.mxu0 %v189
    %408 = vmatprep.subr.mxu0 0.0
    %409 = vmatpush1.msra.mxu0 %v188
    %410 = vmatprep.subr.mxu0 0.0
    %411 = vmatpush1.msra.mxu0 %v187
    %412 = vmatprep.subr.mxu0 0.0
    %413 = vmatpush1.msra.mxu0 %v186
    %414 = vmatprep.subr.mxu0 0.0
    %415 = vmatpush1.msra.mxu0 %v185
    %416 = vmatprep.subr.mxu0 0.0
    %417 = vmatpush1.msra.mxu0 %v184
    %418 = vmatprep.subr.mxu0 0.0
    %419 = vmatpush1.msra.mxu0 %v183
    %420 = vmatprep.subr.mxu0 0.0
    %421 = vmatpush1.msra.mxu0 %v182
    %422 = vmatprep.subr.mxu0 0.0
    %423 = vmatpush1.msra.mxu0 %v181
    %424 = vmatprep.subr.mxu0 0.0
    %425 = vmatpush1.msra.mxu0 %v180
    %426 = vmatprep.subr.mxu0 0.0
    %427 = vmatpush1.msra.mxu0 %v179
    %428 = vmatprep.subr.mxu0 0.0
    %429 = vmatpush2.msra.mxu0 %v210
    %430 = vmatprep.subr.mxu0 0.0
    %431 = vmatpush2.msra.mxu0 %v209
    %432 = vmatprep.subr.mxu0 0.0
    %433 = vmatpush2.msra.mxu0 %v208
    %434 = vmatprep.subr.mxu0 0.0
    %435 = vmatpush2.msra.mxu0 %v207
    %436 = vmatprep.subr.mxu0 0.0
    %437 = vmatpush2.msra.mxu0 %v206
    %438 = vmatprep.subr.mxu0 0.0
    %439 = vmatpush2.msra.mxu0 %v205
    %440 = vmatprep.subr.mxu0 0.0
    %441 = vmatpush2.msra.mxu0 %v204
    %442 = vmatprep.subr.mxu0 0.0
    %443 = vmatpush2.msra.mxu0 %v203
    %444 = vmatprep.subr.mxu0 0.0
    %445 = vmatpush2.msra.mxu0 %v202
    %446 = vmatprep.subr.mxu0 0.0
    %447 = vmatpush2.msra.mxu0 %v201
    %448 = vmatprep.subr.mxu0 0.0
    %449 = vmatpush2.msra.mxu0 %v200
    %450 = vmatprep.subr.mxu0 0.0
    %451 = vmatpush2.msra.mxu0 %v199
    %452 = vmatprep.subr.mxu0 0.0
    %453 = vmatpush2.msra.mxu0 %v198
    %454 = vmatprep.subr.mxu0 0.0
    %455 = vmatpush2.msra.mxu0 %v197
    %456 = vmatprep.subr.mxu0 0.0
    %457 = vmatpush2.msra.mxu0 %v196
    %458 = vmatprep.subr.mxu0 0.0
    %459 = vmatpush2.msra.mxu0 %v195
    %460 = vmatprep.mubr.f32.mxu0 %v300
    %461 = vmatmul.mubr.f32.gmra.mxu0 %v298
    %v462 = vpop.f32.mrf.mxu0
    %v463 = vadd.f32 %v393, %v462
    %v464 = vpop.f32.mrf.mxu0
    %465 = vdwg.mxu0
    %466 = vmatprep.subr.mxu0 0.0
    %467 = vmatpush1.msra.mxu0 %v226
    %468 = vmatprep.subr.mxu0 0.0
    %469 = vmatpush1.msra.mxu0 %v225
    %470 = vmatprep.subr.mxu0 0.0
    %471 = vmatpush1.msra.mxu0 %v224
    %472 = vmatprep.subr.mxu0 0.0
    %473 = vmatpush1.msra.mxu0 %v223
    %474 = vmatprep.subr.mxu0 0.0
    %475 = vmatpush1.msra.mxu0 %v222
    %476 = vmatprep.subr.mxu0 0.0
    %477 = vmatpush1.msra.mxu0 %v221
    %478 = vmatprep.subr.mxu0 0.0
    %479 = vmatpush1.msra.mxu0 %v220
    %480 = vmatprep.subr.mxu0 0.0
    %481 = vmatpush1.msra.mxu0 %v219
    %482 = vmatprep.subr.mxu0 0.0
    %483 = vmatpush1.msra.mxu0 %v218
    %484 = vmatprep.subr.mxu0 0.0
    %485 = vmatpush1.msra.mxu0 %v217
    %486 = vmatprep.subr.mxu0 0.0
    %487 = vmatpush1.msra.mxu0 %v216
    %488 = vmatprep.subr.mxu0 0.0
    %489 = vmatpush1.msra.mxu0 %v215
    %490 = vmatprep.subr.mxu0 0.0
    %491 = vmatpush1.msra.mxu0 %v214
    %492 = vmatprep.subr.mxu0 0.0
    %493 = vmatpush1.msra.mxu0 %v213
    %494 = vmatprep.subr.mxu0 0.0
    %495 = vmatpush1.msra.mxu0 %v212
    %496 = vmatprep.subr.mxu0 0.0
    %497 = vmatpush1.msra.mxu0 %v211
    %498 = vmatprep.subr.mxu0 0.0
    %499 = vmatpush2.msra.mxu0 %v242
    %500 = vmatprep.subr.mxu0 0.0
    %501 = vmatpush2.msra.mxu0 %v241
    %502 = vmatprep.subr.mxu0 0.0
    %503 = vmatpush2.msra.mxu0 %v240
    %504 = vmatprep.subr.mxu0 0.0
    %505 = vmatpush2.msra.mxu0 %v239
    %506 = vmatprep.subr.mxu0 0.0
    %507 = vmatpush2.msra.mxu0 %v238
    %508 = vmatprep.subr.mxu0 0.0
    %509 = vmatpush2.msra.mxu0 %v237
    %510 = vmatprep.subr.mxu0 0.0
    %511 = vmatpush2.msra.mxu0 %v236
    %512 = vmatprep.subr.mxu0 0.0
    %513 = vmatpush2.msra.mxu0 %v235
    %514 = vmatprep.subr.mxu0 0.0
    %515 = vmatpush2.msra.mxu0 %v234
    %516 = vmatprep.subr.mxu0 0.0
    %517 = vmatpush2.msra.mxu0 %v233
    %518 = vmatprep.subr.mxu0 0.0
    %519 = vmatpush2.msra.mxu0 %v232
    %520 = vmatprep.subr.mxu0 0.0
    %521 = vmatpush2.msra.mxu0 %v231
    %522 = vmatprep.subr.mxu0 0.0
    %523 = vmatpush2.msra.mxu0 %v230
    %524 = vmatprep.subr.mxu0 0.0
    %525 = vmatpush2.msra.mxu0 %v229
    %526 = vmatprep.subr.mxu0 0.0
    %527 = vmatpush2.msra.mxu0 %v228
    %528 = vmatprep.subr.mxu0 0.0
    %529 = vmatpush2.msra.mxu0 %v227
    %530 = vmatprep.mubr.f32.mxu0 %v316
    %531 = vmatmul.mubr.f32.gmra.mxu0 %v308
    %v532 = vpop.f32.mrf.mxu0
    %v533 = vadd.f32 %v463, %v532
    %v534 = vpop.f32.mrf.mxu0
    %535 = vdwg.mxu0
    %536 = vmatprep.subr.mxu0 0.0
    %537 = vmatpush1.msra.mxu0 %v258
    %538 = vmatprep.subr.mxu0 0.0
    %539 = vmatpush1.msra.mxu0 %v257
    %540 = vmatprep.subr.mxu0 0.0
    %541 = vmatpush1.msra.mxu0 %v256
    %542 = vmatprep.subr.mxu0 0.0
    %543 = vmatpush1.msra.mxu0 %v255
    %544 = vmatprep.subr.mxu0 0.0
    %545 = vmatpush1.msra.mxu0 %v254
    %546 = vmatprep.subr.mxu0 0.0
    %547 = vmatpush1.msra.mxu0 %v253
    %548 = vmatprep.subr.mxu0 0.0
    %549 = vmatpush1.msra.mxu0 %v252
    %550 = vmatprep.subr.mxu0 0.0
    %551 = vmatpush1.msra.mxu0 %v251
    %552 = vmatprep.subr.mxu0 0.0
    %553 = vmatpush1.msra.mxu0 %v250
    %554 = vmatprep.subr.mxu0 0.0
    %555 = vmatpush1.msra.mxu0 %v249
    %556 = vmatprep.subr.mxu0 0.0
    %557 = vmatpush1.msra.mxu0 %v248
    %558 = vmatprep.subr.mxu0 0.0
    %559 = vmatpush1.msra.mxu0 %v247
    %560 = vmatprep.subr.mxu0 0.0
    %561 = vmatpush1.msra.mxu0 %v246
    %562 = vmatprep.subr.mxu0 0.0
    %563 = vmatpush1.msra.mxu0 %v245
    %564 = vmatprep.subr.mxu0 0.0
    %565 = vmatpush1.msra.mxu0 %v244
    %566 = vmatprep.subr.mxu0 0.0
    %567 = vmatpush1.msra.mxu0 %v243
    %568 = vmatprep.subr.mxu0 0.0
    %569 = vmatpush2.msra.mxu0 %v274
    %570 = vmatprep.subr.mxu0 0.0
    %571 = vmatpush2.msra.mxu0 %v273
    %572 = vmatprep.subr.mxu0 0.0
    %573 = vmatpush2.msra.mxu0 %v272
    %574 = vmatprep.subr.mxu0 0.0
    %575 = vmatpush2.msra.mxu0 %v271
    %576 = vmatprep.subr.mxu0 0.0
    %577 = vmatpush2.msra.mxu0 %v270
    %578 = vmatprep.subr.mxu0 0.0
    %579 = vmatpush2.msra.mxu0 %v269
    %580 = vmatprep.subr.mxu0 0.0
    %581 = vmatpush2.msra.mxu0 %v268
    %582 = vmatprep.subr.mxu0 0.0
    %583 = vmatpush2.msra.mxu0 %v267
    %584 = vmatprep.subr.mxu0 0.0
    %585 = vmatpush2.msra.mxu0 %v266
    %586 = vmatprep.subr.mxu0 0.0
    %587 = vmatpush2.msra.mxu0 %v265
    %588 = vmatprep.subr.mxu0 0.0
    %589 = vmatpush2.msra.mxu0 %v264
    %590 = vmatprep.subr.mxu0 0.0
    %591 = vmatpush2.msra.mxu0 %v263
    %592 = vmatprep.subr.mxu0 0.0
    %593 = vmatpush2.msra.mxu0 %v262
    %594 = vmatprep.subr.mxu0 0.0
    %595 = vmatpush2.msra.mxu0 %v261
    %596 = vmatprep.subr.mxu0 0.0
    %597 = vmatpush2.msra.mxu0 %v260
    %598 = vmatprep.subr.mxu0 0.0
    %599 = vmatpush2.msra.mxu0 %v259
    %600 = vmatprep.mubr.f32.mxu0 %v317
    %601 = vmatmul.mubr.f32.gmra.mxu0 %v315
    %v602 = vpop.f32.mrf.mxu0
    %v603 = vadd.f32 %v533, %v602
    %v604 = vpop.f32.mrf.mxu0
    %605 = vdwg.mxu0
    %606 = vst [vmem:[#allocation2] sm:$0x3] %v603
    %v607 = vld [vmem:[#allocation6] sm:$0xff]
    %v608 = vld [vmem:[#allocation6 + $0x8] sm:$0xff]
    %v609 = vld [vmem:[#allocation11] sm:$0xff]
    %v610 = vld [vmem:[#allocation11 + $0x8] sm:$0xff]
    %v611 = vld [vmem:[#allocation11 + $0x10] sm:$0xff]
    %v612 = vld [vmem:[#allocation11 + $0x18] sm:$0xff]
    %v613 = vld [vmem:[#allocation11 + $0x20] sm:$0xff]
    %v614 = vld [vmem:[#allocation11 + $0x28] sm:$0xff]
    %v615 = vld [vmem:[#allocation11 + $0x30] sm:$0xff]
    %v616 = vld [vmem:[#allocation11 + $0x38] sm:$0xff]
    %v617 = vld [vmem:[#allocation11 + $0x40] sm:$0xff]
    %v618 = vld [vmem:[#allocation11 + $0x48] sm:$0xff]
    %v619 = vld [vmem:[#allocation11 + $0x50] sm:$0xff]
    %v620 = vld [vmem:[#allocation11 + $0x58] sm:$0xff]
    %v621 = vld [vmem:[#allocation11 + $0x60] sm:$0xff]
    %v622 = vld [vmem:[#allocation11 + $0x68] sm:$0xff]
    %v623 = vld [vmem:[#allocation11 + $0x70] sm:$0xff]
    %v624 = vld [vmem:[#allocation11 + $0x78] sm:$0xff]
    %v625 = vld [vmem:[#allocation11 + $0x80] sm:$0xff]
    %v626 = vld [vmem:[#allocation11 + $0x88] sm:$0xff]
    %v627 = vld [vmem:[#allocation11 + $0x90] sm:$0xff]
    %v628 = vld [vmem:[#allocation11 + $0x98] sm:$0xff]
    %v629 = vld [vmem:[#allocation11 + $0xa0] sm:$0xff]
    %v630 = vld [vmem:[#allocation11 + $0xa8] sm:$0xff]
    %v631 = vld [vmem:[#allocation11 + $0xb0] sm:$0xff]
    %v632 = vld [vmem:[#allocation11 + $0xb8] sm:$0xff]
    %v633 = vld [vmem:[#allocation11 + $0xc0] sm:$0xff]
    %v634 = vld [vmem:[#allocation11 + $0xc8] sm:$0xff]
    %v635 = vld [vmem:[#allocation11 + $0xd0] sm:$0xff]
    %v636 = vld [vmem:[#allocation11 + $0xd8] sm:$0xff]
    %v637 = vld [vmem:[#allocation11 + $0xe0] sm:$0xff]
    %v638 = vld [vmem:[#allocation11 + $0xe8] sm:$0xff]
    %v639 = vld [vmem:[#allocation11 + $0xf0] sm:$0xff]
    %v640 = vld [vmem:[#allocation11 + $0xf8] sm:$0xff]
    %v641 = vld [vmem:[#allocation11 + $0x100] sm:$0xff]
    %v642 = vld [vmem:[#allocation11 + $0x108] sm:$0xff]
    %v643 = vld [vmem:[#allocation11 + $0x110] sm:$0xff]
    %v644 = vld [vmem:[#allocation11 + $0x118] sm:$0xff]
    %v645 = vld [vmem:[#allocation11 + $0x120] sm:$0xff]
    %v646 = vld [vmem:[#allocation11 + $0x128] sm:$0xff]
    %v647 = vld [vmem:[#allocation11 + $0x130] sm:$0xff]
    %v648 = vld [vmem:[#allocation11 + $0x138] sm:$0xff]
    %v649 = vld [vmem:[#allocation11 + $0x140] sm:$0xff]
    %v650 = vld [vmem:[#allocation11 + $0x148] sm:$0xff]
    %v651 = vld [vmem:[#allocation11 + $0x150] sm:$0xff]
    %v652 = vld [vmem:[#allocation11 + $0x158] sm:$0xff]
    %v653 = vld [vmem:[#allocation11 + $0x160] sm:$0xff]
    %v654 = vld [vmem:[#allocation11 + $0x168] sm:$0xff]
    %v655 = vld [vmem:[#allocation11 + $0x170] sm:$0xff]
    %v656 = vld [vmem:[#allocation11 + $0x178] sm:$0xff]
    %v657 = vld [vmem:[#allocation11 + $0x180] sm:$0xff]
    %v658 = vld [vmem:[#allocation11 + $0x188] sm:$0xff]
    %v659 = vld [vmem:[#allocation11 + $0x190] sm:$0xff]
    %v660 = vld [vmem:[#allocation11 + $0x198] sm:$0xff]
    %v661 = vld [vmem:[#allocation11 + $0x1a0] sm:$0xff]
    %v662 = vld [vmem:[#allocation11 + $0x1a8] sm:$0xff]
    %v663 = vld [vmem:[#allocation11 + $0x1b0] sm:$0xff]
    %v664 = vld [vmem:[#allocation11 + $0x1b8] sm:$0xff]
    %v665 = vld [vmem:[#allocation11 + $0x1c0] sm:$0xff]
    %v666 = vld [vmem:[#allocation11 + $0x1c8] sm:$0xff]
    %v667 = vld [vmem:[#allocation11 + $0x1d0] sm:$0xff]
    %v668 = vld [vmem:[#allocation11 + $0x1d8] sm:$0xff]
    %v669 = vld [vmem:[#allocation11 + $0x1e0] sm:$0xff]
    %v670 = vld [vmem:[#allocation11 + $0x1e8] sm:$0xff]
    %v671 = vld [vmem:[#allocation11 + $0x1f0] sm:$0xff]
    %v672 = vld [vmem:[#allocation11 + $0x1f8] sm:$0xff]
    %v673 = vld [vmem:[#allocation11 + $0x200] sm:$0xff]
    %v674 = vld [vmem:[#allocation11 + $0x208] sm:$0xff]
    %v675 = vld [vmem:[#allocation11 + $0x210] sm:$0xff]
    %v676 = vld [vmem:[#allocation11 + $0x218] sm:$0xff]
    %v677 = vld [vmem:[#allocation11 + $0x220] sm:$0xff]
    %v678 = vld [vmem:[#allocation11 + $0x228] sm:$0xff]
    %v679 = vld [vmem:[#allocation11 + $0x230] sm:$0xff]
    %v680 = vld [vmem:[#allocation11 + $0x238] sm:$0xff]
    %v681 = vld [vmem:[#allocation11 + $0x240] sm:$0xff]
    %v682 = vld [vmem:[#allocation11 + $0x248] sm:$0xff]
    %v683 = vld [vmem:[#allocation11 + $0x250] sm:$0xff]
    %v684 = vld [vmem:[#allocation11 + $0x258] sm:$0xff]
    %v685 = vld [vmem:[#allocation11 + $0x260] sm:$0xff]
    %v686 = vld [vmem:[#allocation11 + $0x268] sm:$0xff]
    %v687 = vld [vmem:[#allocation11 + $0x270] sm:$0xff]
    %v688 = vld [vmem:[#allocation11 + $0x278] sm:$0xff]
    %v689 = vld [vmem:[#allocation11 + $0x280] sm:$0xff]
    %v690 = vld [vmem:[#allocation11 + $0x288] sm:$0xff]
    %v691 = vld [vmem:[#allocation11 + $0x290] sm:$0xff]
    %v692 = vld [vmem:[#allocation11 + $0x298] sm:$0xff]
    %v693 = vld [vmem:[#allocation11 + $0x2a0] sm:$0xff]
    %v694 = vld [vmem:[#allocation11 + $0x2a8] sm:$0xff]
    %v695 = vld [vmem:[#allocation11 + $0x2b0] sm:$0xff]
    %v696 = vld [vmem:[#allocation11 + $0x2b8] sm:$0xff]
    %v697 = vld [vmem:[#allocation11 + $0x2c0] sm:$0xff]
    %v698 = vld [vmem:[#allocation11 + $0x2c8] sm:$0xff]
    %v699 = vld [vmem:[#allocation11 + $0x2d0] sm:$0xff]
    %v700 = vld [vmem:[#allocation11 + $0x2d8] sm:$0xff]
    %v701 = vld [vmem:[#allocation11 + $0x2e0] sm:$0xff]
    %v702 = vld [vmem:[#allocation11 + $0x2e8] sm:$0xff]
    %v703 = vld [vmem:[#allocation11 + $0x2f0] sm:$0xff]
    %v704 = vld [vmem:[#allocation11 + $0x2f8] sm:$0xff]
    %v705 = vld [vmem:[#allocation11 + $0x300] sm:$0xff]
    %v706 = vld [vmem:[#allocation11 + $0x308] sm:$0xff]
    %v707 = vld [vmem:[#allocation11 + $0x310] sm:$0xff]
    %v708 = vld [vmem:[#allocation11 + $0x318] sm:$0xff]
    %v709 = vld [vmem:[#allocation11 + $0x320] sm:$0xff]
    %v710 = vld [vmem:[#allocation11 + $0x328] sm:$0xff]
    %v711 = vld [vmem:[#allocation11 + $0x330] sm:$0xff]
    %v712 = vld [vmem:[#allocation11 + $0x338] sm:$0xff]
    %v713 = vld [vmem:[#allocation11 + $0x340] sm:$0xff]
    %v714 = vld [vmem:[#allocation11 + $0x348] sm:$0xff]
    %v715 = vld [vmem:[#allocation11 + $0x350] sm:$0xff]
    %v716 = vld [vmem:[#allocation11 + $0x358] sm:$0xff]
    %v717 = vld [vmem:[#allocation11 + $0x360] sm:$0xff]
    %v718 = vld [vmem:[#allocation11 + $0x368] sm:$0xff]
    %v719 = vld [vmem:[#allocation11 + $0x370] sm:$0xff]
    %v720 = vld [vmem:[#allocation11 + $0x378] sm:$0xff]
    %v721 = vld [vmem:[#allocation11 + $0x380] sm:$0xff]
    %v722 = vld [vmem:[#allocation11 + $0x388] sm:$0xff]
    %v723 = vld [vmem:[#allocation11 + $0x390] sm:$0xff]
    %v724 = vld [vmem:[#allocation11 + $0x398] sm:$0xff]
    %v725 = vld [vmem:[#allocation11 + $0x3a0] sm:$0xff]
    %v726 = vld [vmem:[#allocation11 + $0x3a8] sm:$0xff]
    %v727 = vld [vmem:[#allocation11 + $0x3b0] sm:$0xff]
    %v728 = vld [vmem:[#allocation11 + $0x3b8] sm:$0xff]
    %v729 = vld [vmem:[#allocation11 + $0x3c0] sm:$0xff]
    %v730 = vld [vmem:[#allocation11 + $0x3c8] sm:$0xff]
    %v731 = vld [vmem:[#allocation11 + $0x3d0] sm:$0xff]
    %v732 = vld [vmem:[#allocation11 + $0x3d8] sm:$0xff]
    %v733 = vld [vmem:[#allocation11 + $0x3e0] sm:$0xff]
    %v734 = vld [vmem:[#allocation11 + $0x3e8] sm:$0xff]
    %v735 = vld [vmem:[#allocation11 + $0x3f0] sm:$0xff]
    %v736 = vld [vmem:[#allocation11 + $0x3f8] sm:$0xff]
    %v737 = vld [vmem:[%s7] sm:$0x1]
    %v739 = vlaneseq
    %v740 = vshrl.u32 %v739, 7
    %v741 = vsub.s32 0, %v740
    %v742 = vrot.slane %v737, %v741
    %v746 = vcombine.high %v607, %v607
    %v748 = vunpack.c.l.s4 1983009808
    %v749 = vunpack.c.0.s8 %v748
    %v750 = vlaneseq
    %v751 = vshrl.u32 %v750, 7
    %v752 = vsub.s32 %v749, %v751
    %v753 = vrot.slane %v607, %v752
    %v755 = vunpack.c.l.s4 1983009808
    %v756 = vunpack.c.0.s8 %v755
    %v757 = vlaneseq
    %v758 = vshrl.u32 %v757, 7
    %v759 = vsub.s32 %v756, %v758
    %v760 = vrot.slane %v746, %v759
    %v761 = vcombine.high %v753, %v753
    %v762 = vcombine.high %v760, %v760
    %v763 = vcombine.high %v608, %v608
    %v765 = vunpack.c.l.s4 1983009808
    %v766 = vunpack.c.0.s8 %v765
    %v767 = vlaneseq
    %v768 = vshrl.u32 %v767, 7
    %v769 = vsub.s32 %v766, %v768
    %v770 = vrot.slane %v608, %v769
    %v772 = vunpack.c.l.s4 1983009808
    %v773 = vunpack.c.0.s8 %v772
    %v774 = vlaneseq
    %v775 = vshrl.u32 %v774, 7
    %v776 = vsub.s32 %v773, %v775
    %v777 = vrot.slane %v763, %v776
    %v778 = vcombine.high %v770, %v770
    %v779 = vcombine.high %v777, %v777
    %788 = vmatprep.subr.mxu0 0.0
    %789 = vmatpush1.msra.mxu0 %v624
    %790 = vmatprep.subr.mxu0 0.0
    %791 = vmatpush1.msra.mxu0 %v623
    %792 = vmatprep.subr.mxu0 0.0
    %793 = vmatpush1.msra.mxu0 %v622
    %794 = vmatprep.subr.mxu0 0.0
    %795 = vmatpush1.msra.mxu0 %v621
    %796 = vmatprep.subr.mxu0 0.0
    %797 = vmatpush1.msra.mxu0 %v620
    %798 = vmatprep.subr.mxu0 0.0
    %799 = vmatpush1.msra.mxu0 %v619
    %800 = vmatprep.subr.mxu0 0.0
    %801 = vmatpush1.msra.mxu0 %v618
    %802 = vmatprep.subr.mxu0 0.0
    %803 = vmatpush1.msra.mxu0 %v617
    %804 = vmatprep.subr.mxu0 0.0
    %805 = vmatpush1.msra.mxu0 %v616
    %806 = vmatprep.subr.mxu0 0.0
    %807 = vmatpush1.msra.mxu0 %v615
    %808 = vmatprep.subr.mxu0 0.0
    %809 = vmatpush1.msra.mxu0 %v614
    %810 = vmatprep.subr.mxu0 0.0
    %811 = vmatpush1.msra.mxu0 %v613
    %812 = vmatprep.subr.mxu0 0.0
    %813 = vmatpush1.msra.mxu0 %v612
    %814 = vmatprep.subr.mxu0 0.0
    %815 = vmatpush1.msra.mxu0 %v611
    %816 = vmatprep.subr.mxu0 0.0
    %817 = vmatpush1.msra.mxu0 %v610
    %818 = vmatprep.subr.mxu0 0.0
    %819 = vmatpush1.msra.mxu0 %v609
    %820 = vmatprep.subr.mxu0 0.0
    %821 = vmatpush2.msra.mxu0 %v640
    %822 = vmatprep.subr.mxu0 0.0
    %823 = vmatpush2.msra.mxu0 %v639
    %824 = vmatprep.subr.mxu0 0.0
    %825 = vmatpush2.msra.mxu0 %v638
    %826 = vmatprep.subr.mxu0 0.0
    %827 = vmatpush2.msra.mxu0 %v637
    %828 = vmatprep.subr.mxu0 0.0
    %829 = vmatpush2.msra.mxu0 %v636
    %830 = vmatprep.subr.mxu0 0.0
    %831 = vmatpush2.msra.mxu0 %v635
    %832 = vmatprep.subr.mxu0 0.0
    %833 = vmatpush2.msra.mxu0 %v634
    %834 = vmatprep.subr.mxu0 0.0
    %835 = vmatpush2.msra.mxu0 %v633
    %836 = vmatprep.subr.mxu0 0.0
    %837 = vmatpush2.msra.mxu0 %v632
    %838 = vmatprep.subr.mxu0 0.0
    %839 = vmatpush2.msra.mxu0 %v631
    %840 = vmatprep.subr.mxu0 0.0
    %841 = vmatpush2.msra.mxu0 %v630
    %842 = vmatprep.subr.mxu0 0.0
    %843 = vmatpush2.msra.mxu0 %v629
    %844 = vmatprep.subr.mxu0 0.0
    %845 = vmatpush2.msra.mxu0 %v628
    %846 = vmatprep.subr.mxu0 0.0
    %847 = vmatpush2.msra.mxu0 %v627
    %848 = vmatprep.subr.mxu0 0.0
    %849 = vmatpush2.msra.mxu0 %v626
    %850 = vmatprep.subr.mxu0 0.0
    %851 = vmatpush2.msra.mxu0 %v625
    %852 = vmatprep.mubr.f32.mxu0 %v761
    %853 = vmatmul.mubr.f32.gmra.mxu0 %v753
    %v854 = vpop.f32.mrf.mxu0
    %v855 = vadd.f32 %v742, %v854
    %v856 = vpop.f32.mrf.mxu0
    %857 = vdwg.mxu0
    %858 = vmatprep.subr.mxu0 0.0
    %859 = vmatpush1.msra.mxu0 %v656
    %860 = vmatprep.subr.mxu0 0.0
    %861 = vmatpush1.msra.mxu0 %v655
    %862 = vmatprep.subr.mxu0 0.0
    %863 = vmatpush1.msra.mxu0 %v654
    %864 = vmatprep.subr.mxu0 0.0
    %865 = vmatpush1.msra.mxu0 %v653
    %866 = vmatprep.subr.mxu0 0.0
    %867 = vmatpush1.msra.mxu0 %v652
    %868 = vmatprep.subr.mxu0 0.0
    %869 = vmatpush1.msra.mxu0 %v651
    %870 = vmatprep.subr.mxu0 0.0
    %871 = vmatpush1.msra.mxu0 %v650
    %872 = vmatprep.subr.mxu0 0.0
    %873 = vmatpush1.msra.mxu0 %v649
    %874 = vmatprep.subr.mxu0 0.0
    %875 = vmatpush1.msra.mxu0 %v648
    %876 = vmatprep.subr.mxu0 0.0
    %877 = vmatpush1.msra.mxu0 %v647
    %878 = vmatprep.subr.mxu0 0.0
    %879 = vmatpush1.msra.mxu0 %v646
    %880 = vmatprep.subr.mxu0 0.0
    %881 = vmatpush1.msra.mxu0 %v645
    %882 = vmatprep.subr.mxu0 0.0
    %883 = vmatpush1.msra.mxu0 %v644
    %884 = vmatprep.subr.mxu0 0.0
    %885 = vmatpush1.msra.mxu0 %v643
    %886 = vmatprep.subr.mxu0 0.0
    %887 = vmatpush1.msra.mxu0 %v642
    %888 = vmatprep.subr.mxu0 0.0
    %889 = vmatpush1.msra.mxu0 %v641
    %890 = vmatprep.subr.mxu0 0.0
    %891 = vmatpush2.msra.mxu0 %v672
    %892 = vmatprep.subr.mxu0 0.0
    %893 = vmatpush2.msra.mxu0 %v671
    %894 = vmatprep.subr.mxu0 0.0
    %895 = vmatpush2.msra.mxu0 %v670
    %896 = vmatprep.subr.mxu0 0.0
    %897 = vmatpush2.msra.mxu0 %v669
    %898 = vmatprep.subr.mxu0 0.0
    %899 = vmatpush2.msra.mxu0 %v668
    %900 = vmatprep.subr.mxu0 0.0
    %901 = vmatpush2.msra.mxu0 %v667
    %902 = vmatprep.subr.mxu0 0.0
    %903 = vmatpush2.msra.mxu0 %v666
    %904 = vmatprep.subr.mxu0 0.0
    %905 = vmatpush2.msra.mxu0 %v665
    %906 = vmatprep.subr.mxu0 0.0
    %907 = vmatpush2.msra.mxu0 %v664
    %908 = vmatprep.subr.mxu0 0.0
    %909 = vmatpush2.msra.mxu0 %v663
    %910 = vmatprep.subr.mxu0 0.0
    %911 = vmatpush2.msra.mxu0 %v662
    %912 = vmatprep.subr.mxu0 0.0
    %913 = vmatpush2.msra.mxu0 %v661
    %914 = vmatprep.subr.mxu0 0.0
    %915 = vmatpush2.msra.mxu0 %v660
    %916 = vmatprep.subr.mxu0 0.0
    %917 = vmatpush2.msra.mxu0 %v659
    %918 = vmatprep.subr.mxu0 0.0
    %919 = vmatpush2.msra.mxu0 %v658
    %920 = vmatprep.subr.mxu0 0.0
    %921 = vmatpush2.msra.mxu0 %v657
    %922 = vmatprep.mubr.f32.mxu0 %v762
    %923 = vmatmul.mubr.f32.gmra.mxu0 %v760
    %v924 = vpop.f32.mrf.mxu0
    %v925 = vadd.f32 %v855, %v924
    %v926 = vpop.f32.mrf.mxu0
    %927 = vdwg.mxu0
    %928 = vmatprep.subr.mxu0 0.0
    %929 = vmatpush1.msra.mxu0 %v688
    %930 = vmatprep.subr.mxu0 0.0
    %931 = vmatpush1.msra.mxu0 %v687
    %932 = vmatprep.subr.mxu0 0.0
    %933 = vmatpush1.msra.mxu0 %v686
    %934 = vmatprep.subr.mxu0 0.0
    %935 = vmatpush1.msra.mxu0 %v685
    %936 = vmatprep.subr.mxu0 0.0
    %937 = vmatpush1.msra.mxu0 %v684
    %938 = vmatprep.subr.mxu0 0.0
    %939 = vmatpush1.msra.mxu0 %v683
    %940 = vmatprep.subr.mxu0 0.0
    %941 = vmatpush1.msra.mxu0 %v682
    %942 = vmatprep.subr.mxu0 0.0
    %943 = vmatpush1.msra.mxu0 %v681
    %944 = vmatprep.subr.mxu0 0.0
    %945 = vmatpush1.msra.mxu0 %v680
    %946 = vmatprep.subr.mxu0 0.0
    %947 = vmatpush1.msra.mxu0 %v679
    %948 = vmatprep.subr.mxu0 0.0
    %949 = vmatpush1.msra.mxu0 %v678
    %950 = vmatprep.subr.mxu0 0.0
    %951 = vmatpush1.msra.mxu0 %v677
    %952 = vmatprep.subr.mxu0 0.0
    %953 = vmatpush1.msra.mxu0 %v676
    %954 = vmatprep.subr.mxu0 0.0
    %955 = vmatpush1.msra.mxu0 %v675
    %956 = vmatprep.subr.mxu0 0.0
    %957 = vmatpush1.msra.mxu0 %v674
    %958 = vmatprep.subr.mxu0 0.0
    %959 = vmatpush1.msra.mxu0 %v673
    %960 = vmatprep.subr.mxu0 0.0
    %961 = vmatpush2.msra.mxu0 %v704
    %962 = vmatprep.subr.mxu0 0.0
    %963 = vmatpush2.msra.mxu0 %v703
    %964 = vmatprep.subr.mxu0 0.0
    %965 = vmatpush2.msra.mxu0 %v702
    %966 = vmatprep.subr.mxu0 0.0
    %967 = vmatpush2.msra.mxu0 %v701
    %968 = vmatprep.subr.mxu0 0.0
    %969 = vmatpush2.msra.mxu0 %v700
    %970 = vmatprep.subr.mxu0 0.0
    %971 = vmatpush2.msra.mxu0 %v699
    %972 = vmatprep.subr.mxu0 0.0
    %973 = vmatpush2.msra.mxu0 %v698
    %974 = vmatprep.subr.mxu0 0.0
    %975 = vmatpush2.msra.mxu0 %v697
    %976 = vmatprep.subr.mxu0 0.0
    %977 = vmatpush2.msra.mxu0 %v696
    %978 = vmatprep.subr.mxu0 0.0
    %979 = vmatpush2.msra.mxu0 %v695
    %980 = vmatprep.subr.mxu0 0.0
    %981 = vmatpush2.msra.mxu0 %v694
    %982 = vmatprep.subr.mxu0 0.0
    %983 = vmatpush2.msra.mxu0 %v693
    %984 = vmatprep.subr.mxu0 0.0
    %985 = vmatpush2.msra.mxu0 %v692
    %986 = vmatprep.subr.mxu0 0.0
    %987 = vmatpush2.msra.mxu0 %v691
    %988 = vmatprep.subr.mxu0 0.0
    %989 = vmatpush2.msra.mxu0 %v690
    %990 = vmatprep.subr.mxu0 0.0
    %991 = vmatpush2.msra.mxu0 %v689
    %992 = vmatprep.mubr.f32.mxu0 %v778
    %993 = vmatmul.mubr.f32.gmra.mxu0 %v770
    %v994 = vpop.f32.mrf.mxu0
    %v995 = vadd.f32 %v925, %v994
    %v996 = vpop.f32.mrf.mxu0
    %997 = vdwg.mxu0
    %998 = vmatprep.subr.mxu0 0.0
    %999 = vmatpush1.msra.mxu0 %v720
    %1000 = vmatprep.subr.mxu0 0.0
    %1001 = vmatpush1.msra.mxu0 %v719
    %1002 = vmatprep.subr.mxu0 0.0
    %1003 = vmatpush1.msra.mxu0 %v718
    %1004 = vmatprep.subr.mxu0 0.0
    %1005 = vmatpush1.msra.mxu0 %v717
    %1006 = vmatprep.subr.mxu0 0.0
    %1007 = vmatpush1.msra.mxu0 %v716
    %1008 = vmatprep.subr.mxu0 0.0
    %1009 = vmatpush1.msra.mxu0 %v715
    %1010 = vmatprep.subr.mxu0 0.0
    %1011 = vmatpush1.msra.mxu0 %v714
    %1012 = vmatprep.subr.mxu0 0.0
    %1013 = vmatpush1.msra.mxu0 %v713
    %1014 = vmatprep.subr.mxu0 0.0
    %1015 = vmatpush1.msra.mxu0 %v712
    %1016 = vmatprep.subr.mxu0 0.0
    %1017 = vmatpush1.msra.mxu0 %v711
    %1018 = vmatprep.subr.mxu0 0.0
    %1019 = vmatpush1.msra.mxu0 %v710
    %1020 = vmatprep.subr.mxu0 0.0
    %1021 = vmatpush1.msra.mxu0 %v709
    %1022 = vmatprep.subr.mxu0 0.0
    %1023 = vmatpush1.msra.mxu0 %v708
    %1024 = vmatprep.subr.mxu0 0.0
    %1025 = vmatpush1.msra.mxu0 %v707
    %1026 = vmatprep.subr.mxu0 0.0
    %1027 = vmatpush1.msra.mxu0 %v706
    %1028 = vmatprep.subr.mxu0 0.0
    %1029 = vmatpush1.msra.mxu0 %v705
    %1030 = vmatprep.subr.mxu0 0.0
    %1031 = vmatpush2.msra.mxu0 %v736
    %1032 = vmatprep.subr.mxu0 0.0
    %1033 = vmatpush2.msra.mxu0 %v735
    %1034 = vmatprep.subr.mxu0 0.0
    %1035 = vmatpush2.msra.mxu0 %v734
    %1036 = vmatprep.subr.mxu0 0.0
    %1037 = vmatpush2.msra.mxu0 %v733
    %1038 = vmatprep.subr.mxu0 0.0
    %1039 = vmatpush2.msra.mxu0 %v732
    %1040 = vmatprep.subr.mxu0 0.0
    %1041 = vmatpush2.msra.mxu0 %v731
    %1042 = vmatprep.subr.mxu0 0.0
    %1043 = vmatpush2.msra.mxu0 %v730
    %1044 = vmatprep.subr.mxu0 0.0
    %1045 = vmatpush2.msra.mxu0 %v729
    %1046 = vmatprep.subr.mxu0 0.0
    %1047 = vmatpush2.msra.mxu0 %v728
    %1048 = vmatprep.subr.mxu0 0.0
    %1049 = vmatpush2.msra.mxu0 %v727
    %1050 = vmatprep.subr.mxu0 0.0
    %1051 = vmatpush2.msra.mxu0 %v726
    %1052 = vmatprep.subr.mxu0 0.0
    %1053 = vmatpush2.msra.mxu0 %v725
    %1054 = vmatprep.subr.mxu0 0.0
    %1055 = vmatpush2.msra.mxu0 %v724
    %1056 = vmatprep.subr.mxu0 0.0
    %1057 = vmatpush2.msra.mxu0 %v723
    %1058 = vmatprep.subr.mxu0 0.0
    %1059 = vmatpush2.msra.mxu0 %v722
    %1060 = vmatprep.subr.mxu0 0.0
    %1061 = vmatpush2.msra.mxu0 %v721
    %1062 = vmatprep.mubr.f32.mxu0 %v779
    %1063 = vmatmul.mubr.f32.gmra.mxu0 %v777
    %v1064 = vpop.f32.mrf.mxu0
    %v1065 = vadd.f32 %v995, %v1064
    %v1066 = vpop.f32.mrf.mxu0
    %1067 = vdwg.mxu0
    %1068 = vst [vmem:[#allocation2 + $0x2] sm:$0x3] %v1065
    %v1069 = vld [vmem:[#allocation8] sm:$0xf]
    %v1070 = vld [vmem:[#allocation12] sm:$0xff]
    %v1071 = vld [vmem:[#allocation12 + $0x8] sm:$0xff]
    %v1072 = vld [vmem:[#allocation12 + $0x10] sm:$0xff]
    %v1073 = vld [vmem:[#allocation12 + $0x18] sm:$0xff]
    %v1074 = vld [vmem:[#allocation12 + $0x20] sm:$0xff]
    %v1075 = vld [vmem:[#allocation12 + $0x28] sm:$0xff]
    %v1076 = vld [vmem:[#allocation12 + $0x30] sm:$0xff]
    %v1077 = vld [vmem:[#allocation12 + $0x38] sm:$0xff]
    %v1078 = vld [vmem:[#allocation12 + $0x40] sm:$0xff]
    %v1079 = vld [vmem:[#allocation12 + $0x48] sm:$0xff]
    %v1080 = vld [vmem:[#allocation12 + $0x50] sm:$0xff]
    %v1081 = vld [vmem:[#allocation12 + $0x58] sm:$0xff]
    %v1082 = vld [vmem:[#allocation12 + $0x60] sm:$0xff]
    %v1083 = vld [vmem:[#allocation12 + $0x68] sm:$0xff]
    %v1084 = vld [vmem:[#allocation12 + $0x70] sm:$0xff]
    %v1085 = vld [vmem:[#allocation12 + $0x78] sm:$0xff]
    %v1086 = vld [vmem:[#allocation12 + $0x80] sm:$0xff]
    %v1087 = vld [vmem:[#allocation12 + $0x88] sm:$0xff]
    %v1088 = vld [vmem:[#allocation12 + $0x90] sm:$0xff]
    %v1089 = vld [vmem:[#allocation12 + $0x98] sm:$0xff]
    %v1090 = vld [vmem:[#allocation12 + $0xa0] sm:$0xff]
    %v1091 = vld [vmem:[#allocation12 + $0xa8] sm:$0xff]
    %v1092 = vld [vmem:[#allocation12 + $0xb0] sm:$0xff]
    %v1093 = vld [vmem:[#allocation12 + $0xb8] sm:$0xff]
    %v1094 = vld [vmem:[#allocation12 + $0xc0] sm:$0xff]
    %v1095 = vld [vmem:[#allocation12 + $0xc8] sm:$0xff]
    %v1096 = vld [vmem:[#allocation12 + $0xd0] sm:$0xff]
    %v1097 = vld [vmem:[#allocation12 + $0xd8] sm:$0xff]
    %v1098 = vld [vmem:[#allocation12 + $0xe0] sm:$0xff]
    %v1099 = vld [vmem:[#allocation12 + $0xe8] sm:$0xff]
    %v1100 = vld [vmem:[#allocation12 + $0xf0] sm:$0xff]
    %v1101 = vld [vmem:[#allocation12 + $0xf8] sm:$0xff]
    %v1102 = vld [vmem:[%s7] sm:$0x1]
    %v1104 = vlaneseq
    %v1105 = vshrl.u32 %v1104, 7
    %v1106 = vsub.s32 0, %v1105
    %v1107 = vrot.slane %v1102, %v1106
    %v1111 = vunpack.c.l.s4 1983009808
    %v1112 = vunpack.c.0.s8 %v1111
    %v1113 = vlaneseq
    %v1114 = vshrl.u32 %v1113, 7
    %v1115 = vsub.s32 %v1112, %v1114
    %v1116 = vrot.slane %v1069, %v1115
    %v1117 = vcombine.high %v1116, %v1116
    %1120 = vmatprep.subr.mxu0 0.0
    %1121 = vmatpush1.msra.mxu0 %v1085
    %1122 = vmatprep.subr.mxu0 0.0
    %1123 = vmatpush1.msra.mxu0 %v1084
    %1124 = vmatprep.subr.mxu0 0.0
    %1125 = vmatpush1.msra.mxu0 %v1083
    %1126 = vmatprep.subr.mxu0 0.0
    %1127 = vmatpush1.msra.mxu0 %v1082
    %1128 = vmatprep.subr.mxu0 0.0
    %1129 = vmatpush1.msra.mxu0 %v1081
    %1130 = vmatprep.subr.mxu0 0.0
    %1131 = vmatpush1.msra.mxu0 %v1080
    %1132 = vmatprep.subr.mxu0 0.0
    %1133 = vmatpush1.msra.mxu0 %v1079
    %1134 = vmatprep.subr.mxu0 0.0
    %1135 = vmatpush1.msra.mxu0 %v1078
    %1136 = vmatprep.subr.mxu0 0.0
    %1137 = vmatpush1.msra.mxu0 %v1077
    %1138 = vmatprep.subr.mxu0 0.0
    %1139 = vmatpush1.msra.mxu0 %v1076
    %1140 = vmatprep.subr.mxu0 0.0
    %1141 = vmatpush1.msra.mxu0 %v1075
    %1142 = vmatprep.subr.mxu0 0.0
    %1143 = vmatpush1.msra.mxu0 %v1074
    %1144 = vmatprep.subr.mxu0 0.0
    %1145 = vmatpush1.msra.mxu0 %v1073
    %1146 = vmatprep.subr.mxu0 0.0
    %1147 = vmatpush1.msra.mxu0 %v1072
    %1148 = vmatprep.subr.mxu0 0.0
    %1149 = vmatpush1.msra.mxu0 %v1071
    %1150 = vmatprep.subr.mxu0 0.0
    %1151 = vmatpush1.msra.mxu0 %v1070
    %1152 = vmatprep.subr.mxu0 0.0
    %1153 = vmatpush2.msra.mxu0 %v1101
    %1154 = vmatprep.subr.mxu0 0.0
    %1155 = vmatpush2.msra.mxu0 %v1100
    %1156 = vmatprep.subr.mxu0 0.0
    %1157 = vmatpush2.msra.mxu0 %v1099
    %1158 = vmatprep.subr.mxu0 0.0
    %1159 = vmatpush2.msra.mxu0 %v1098
    %1160 = vmatprep.subr.mxu0 0.0
    %1161 = vmatpush2.msra.mxu0 %v1097
    %1162 = vmatprep.subr.mxu0 0.0
    %1163 = vmatpush2.msra.mxu0 %v1096
    %1164 = vmatprep.subr.mxu0 0.0
    %1165 = vmatpush2.msra.mxu0 %v1095
    %1166 = vmatprep.subr.mxu0 0.0
    %1167 = vmatpush2.msra.mxu0 %v1094
    %1168 = vmatprep.subr.mxu0 0.0
    %1169 = vmatpush2.msra.mxu0 %v1093
    %1170 = vmatprep.subr.mxu0 0.0
    %1171 = vmatpush2.msra.mxu0 %v1092
    %1172 = vmatprep.subr.mxu0 0.0
    %1173 = vmatpush2.msra.mxu0 %v1091
    %1174 = vmatprep.subr.mxu0 0.0
    %1175 = vmatpush2.msra.mxu0 %v1090
    %1176 = vmatprep.subr.mxu0 0.0
    %1177 = vmatpush2.msra.mxu0 %v1089
    %1178 = vmatprep.subr.mxu0 0.0
    %1179 = vmatpush2.msra.mxu0 %v1088
    %1180 = vmatprep.subr.mxu0 0.0
    %1181 = vmatpush2.msra.mxu0 %v1087
    %1182 = vmatprep.subr.mxu0 0.0
    %1183 = vmatpush2.msra.mxu0 %v1086
    %1184 = vmatprep.mubr.f32.mxu0 %v1117
    %1185 = vmatmul.mubr.f32.gmra.mxu0 %v1116
    %v1186 = vpop.f32.mrf.mxu0
    %v1187 = vadd.f32 %v1107, %v1186
    %v1188 = vpop.f32.mrf.mxu0
    %1189 = vdwg.mxu0
    %1190 = vst [vmem:[#allocation2 + $0x4] sm:$0x3] %v1187
    %v1191 = vld [vmem:[%s3] sm:$0xf]
    %v1192 = vld [vmem:[#allocation12] sm:$0xff]
    %v1193 = vld [vmem:[#allocation12 + $0x8] sm:$0xff]
    %v1194 = vld [vmem:[#allocation12 + $0x10] sm:$0xff]
    %v1195 = vld [vmem:[#allocation12 + $0x18] sm:$0xff]
    %v1196 = vld [vmem:[#allocation12 + $0x20] sm:$0xff]
    %v1197 = vld [vmem:[#allocation12 + $0x28] sm:$0xff]
    %v1198 = vld [vmem:[#allocation12 + $0x30] sm:$0xff]
    %v1199 = vld [vmem:[#allocation12 + $0x38] sm:$0xff]
    %v1200 = vld [vmem:[#allocation12 + $0x40] sm:$0xff]
    %v1201 = vld [vmem:[#allocation12 + $0x48] sm:$0xff]
    %v1202 = vld [vmem:[#allocation12 + $0x50] sm:$0xff]
    %v1203 = vld [vmem:[#allocation12 + $0x58] sm:$0xff]
    %v1204 = vld [vmem:[#allocation12 + $0x60] sm:$0xff]
    %v1205 = vld [vmem:[#allocation12 + $0x68] sm:$0xff]
    %v1206 = vld [vmem:[#allocation12 + $0x70] sm:$0xff]
    %v1207 = vld [vmem:[#allocation12 + $0x78] sm:$0xff]
    %v1208 = vld [vmem:[#allocation12 + $0x80] sm:$0xff]
    %v1209 = vld [vmem:[#allocation12 + $0x88] sm:$0xff]
    %v1210 = vld [vmem:[#allocation12 + $0x90] sm:$0xff]
    %v1211 = vld [vmem:[#allocation12 + $0x98] sm:$0xff]
    %v1212 = vld [vmem:[#allocation12 + $0xa0] sm:$0xff]
    %v1213 = vld [vmem:[#allocation12 + $0xa8] sm:$0xff]
    %v1214 = vld [vmem:[#allocation12 + $0xb0] sm:$0xff]
    %v1215 = vld [vmem:[#allocation12 + $0xb8] sm:$0xff]
    %v1216 = vld [vmem:[#allocation12 + $0xc0] sm:$0xff]
    %v1217 = vld [vmem:[#allocation12 + $0xc8] sm:$0xff]
    %v1218 = vld [vmem:[#allocation12 + $0xd0] sm:$0xff]
    %v1219 = vld [vmem:[#allocation12 + $0xd8] sm:$0xff]
    %v1220 = vld [vmem:[#allocation12 + $0xe0] sm:$0xff]
    %v1221 = vld [vmem:[#allocation12 + $0xe8] sm:$0xff]
    %v1222 = vld [vmem:[#allocation12 + $0xf0] sm:$0xff]
    %v1223 = vld [vmem:[#allocation12 + $0xf8] sm:$0xff]
    %v1224 = vld [vmem:[%s7] sm:$0x1]
    %v1226 = vlaneseq
    %v1227 = vshrl.u32 %v1226, 7
    %v1228 = vsub.s32 0, %v1227
    %v1229 = vrot.slane %v1224, %v1228
    %v1233 = vunpack.c.l.s4 1983009808
    %v1234 = vunpack.c.0.s8 %v1233
    %v1235 = vlaneseq
    %v1236 = vshrl.u32 %v1235, 7
    %v1237 = vsub.s32 %v1234, %v1236
    %v1238 = vrot.slane %v1191, %v1237
    %v1239 = vcombine.high %v1238, %v1238
    %1242 = vmatprep.subr.mxu0 0.0
    %1243 = vmatpush1.msra.mxu0 %v1207
    %1244 = vmatprep.subr.mxu0 0.0
    %1245 = vmatpush1.msra.mxu0 %v1206
    %1246 = vmatprep.subr.mxu0 0.0
    %1247 = vmatpush1.msra.mxu0 %v1205
    %1248 = vmatprep.subr.mxu0 0.0
    %1249 = vmatpush1.msra.mxu0 %v1204
    %1250 = vmatprep.subr.mxu0 0.0
    %1251 = vmatpush1.msra.mxu0 %v1203
    %1252 = vmatprep.subr.mxu0 0.0
    %1253 = vmatpush1.msra.mxu0 %v1202
    %1254 = vmatprep.subr.mxu0 0.0
    %1255 = vmatpush1.msra.mxu0 %v1201
    %1256 = vmatprep.subr.mxu0 0.0
    %1257 = vmatpush1.msra.mxu0 %v1200
    %1258 = vmatprep.subr.mxu0 0.0
    %1259 = vmatpush1.msra.mxu0 %v1199
    %1260 = vmatprep.subr.mxu0 0.0
    %1261 = vmatpush1.msra.mxu0 %v1198
    %1262 = vmatprep.subr.mxu0 0.0
    %1263 = vmatpush1.msra.mxu0 %v1197
    %1264 = vmatprep.subr.mxu0 0.0
    %1265 = vmatpush1.msra.mxu0 %v1196
    %1266 = vmatprep.subr.mxu0 0.0
    %1267 = vmatpush1.msra.mxu0 %v1195
    %1268 = vmatprep.subr.mxu0 0.0
    %1269 = vmatpush1.msra.mxu0 %v1194
    %1270 = vmatprep.subr.mxu0 0.0
    %1271 = vmatpush1.msra.mxu0 %v1193
    %1272 = vmatprep.subr.mxu0 0.0
    %1273 = vmatpush1.msra.mxu0 %v1192
    %1274 = vmatprep.subr.mxu0 0.0
    %1275 = vmatpush2.msra.mxu0 %v1223
    %1276 = vmatprep.subr.mxu0 0.0
    %1277 = vmatpush2.msra.mxu0 %v1222
    %1278 = vmatprep.subr.mxu0 0.0
    %1279 = vmatpush2.msra.mxu0 %v1221
    %1280 = vmatprep.subr.mxu0 0.0
    %1281 = vmatpush2.msra.mxu0 %v1220
    %1282 = vmatprep.subr.mxu0 0.0
    %1283 = vmatpush2.msra.mxu0 %v1219
    %1284 = vmatprep.subr.mxu0 0.0
    %1285 = vmatpush2.msra.mxu0 %v1218
    %1286 = vmatprep.subr.mxu0 0.0
    %1287 = vmatpush2.msra.mxu0 %v1217
    %1288 = vmatprep.subr.mxu0 0.0
    %1289 = vmatpush2.msra.mxu0 %v1216
    %1290 = vmatprep.subr.mxu0 0.0
    %1291 = vmatpush2.msra.mxu0 %v1215
    %1292 = vmatprep.subr.mxu0 0.0
    %1293 = vmatpush2.msra.mxu0 %v1214
    %1294 = vmatprep.subr.mxu0 0.0
    %1295 = vmatpush2.msra.mxu0 %v1213
    %1296 = vmatprep.subr.mxu0 0.0
    %1297 = vmatpush2.msra.mxu0 %v1212
    %1298 = vmatprep.subr.mxu0 0.0
    %1299 = vmatpush2.msra.mxu0 %v1211
    %1300 = vmatprep.subr.mxu0 0.0
    %1301 = vmatpush2.msra.mxu0 %v1210
    %1302 = vmatprep.subr.mxu0 0.0
    %1303 = vmatpush2.msra.mxu0 %v1209
    %1304 = vmatprep.subr.mxu0 0.0
    %1305 = vmatpush2.msra.mxu0 %v1208
    %1306 = vmatprep.mubr.f32.mxu0 %v1239
    %1307 = vmatmul.mubr.f32.gmra.mxu0 %v1238
    %v1308 = vpop.f32.mrf.mxu0
    %v1309 = vadd.f32 %v1229, %v1308
    %v1310 = vpop.f32.mrf.mxu0
    %1311 = vdwg.mxu0
    %1312 = vst [vmem:[#allocation2 + $0x6] sm:$0x3] %v1309
    %v1313 = vld [vmem:[#allocation9] sm:$0xf]
    %v1314 = vld [vmem:[#allocation12] sm:$0xff]
    %v1315 = vld [vmem:[#allocation12 + $0x8] sm:$0xff]
    %v1316 = vld [vmem:[#allocation12 + $0x10] sm:$0xff]
    %v1317 = vld [vmem:[#allocation12 + $0x18] sm:$0xff]
    %v1318 = vld [vmem:[#allocation12 + $0x20] sm:$0xff]
    %v1319 = vld [vmem:[#allocation12 + $0x28] sm:$0xff]
    %v1320 = vld [vmem:[#allocation12 + $0x30] sm:$0xff]
    %v1321 = vld [vmem:[#allocation12 + $0x38] sm:$0xff]
    %v1322 = vld [vmem:[#allocation12 + $0x40] sm:$0xff]
    %v1323 = vld [vmem:[#allocation12 + $0x48] sm:$0xff]
    %v1324 = vld [vmem:[#allocation12 + $0x50] sm:$0xff]
    %v1325 = vld [vmem:[#allocation12 + $0x58] sm:$0xff]
    %v1326 = vld [vmem:[#allocation12 + $0x60] sm:$0xff]
    %v1327 = vld [vmem:[#allocation12 + $0x68] sm:$0xff]
    %v1328 = vld [vmem:[#allocation12 + $0x70] sm:$0xff]
    %v1329 = vld [vmem:[#allocation12 + $0x78] sm:$0xff]
    %v1330 = vld [vmem:[#allocation12 + $0x80] sm:$0xff]
    %v1331 = vld [vmem:[#allocation12 + $0x88] sm:$0xff]
    %v1332 = vld [vmem:[#allocation12 + $0x90] sm:$0xff]
    %v1333 = vld [vmem:[#allocation12 + $0x98] sm:$0xff]
    %v1334 = vld [vmem:[#allocation12 + $0xa0] sm:$0xff]
    %v1335 = vld [vmem:[#allocation12 + $0xa8] sm:$0xff]
    %v1336 = vld [vmem:[#allocation12 + $0xb0] sm:$0xff]
    %v1337 = vld [vmem:[#allocation12 + $0xb8] sm:$0xff]
    %v1338 = vld [vmem:[#allocation12 + $0xc0] sm:$0xff]
    %v1339 = vld [vmem:[#allocation12 + $0xc8] sm:$0xff]
    %v1340 = vld [vmem:[#allocation12 + $0xd0] sm:$0xff]
    %v1341 = vld [vmem:[#allocation12 + $0xd8] sm:$0xff]
    %v1342 = vld [vmem:[#allocation12 + $0xe0] sm:$0xff]
    %v1343 = vld [vmem:[#allocation12 + $0xe8] sm:$0xff]
    %v1344 = vld [vmem:[#allocation12 + $0xf0] sm:$0xff]
    %v1345 = vld [vmem:[#allocation12 + $0xf8] sm:$0xff]
    %v1346 = vld [vmem:[%s7] sm:$0x1]
    %v1348 = vlaneseq
    %v1349 = vshrl.u32 %v1348, 7
    %v1350 = vsub.s32 0, %v1349
    %v1351 = vrot.slane %v1346, %v1350
    %v1355 = vunpack.c.l.s4 1983009808
    %v1356 = vunpack.c.0.s8 %v1355
    %v1357 = vlaneseq
    %v1358 = vshrl.u32 %v1357, 7
    %v1359 = vsub.s32 %v1356, %v1358
    %v1360 = vrot.slane %v1313, %v1359
    %v1361 = vcombine.high %v1360, %v1360
    %1364 = vmatprep.subr.mxu0 0.0
    %1365 = vmatpush1.msra.mxu0 %v1329
    %1366 = vmatprep.subr.mxu0 0.0
    %1367 = vmatpush1.msra.mxu0 %v1328
    %1368 = vmatprep.subr.mxu0 0.0
    %1369 = vmatpush1.msra.mxu0 %v1327
    %1370 = vmatprep.subr.mxu0 0.0
    %1371 = vmatpush1.msra.mxu0 %v1326
    %1372 = vmatprep.subr.mxu0 0.0
    %1373 = vmatpush1.msra.mxu0 %v1325
    %1374 = vmatprep.subr.mxu0 0.0
    %1375 = vmatpush1.msra.mxu0 %v1324
    %1376 = vmatprep.subr.mxu0 0.0
    %1377 = vmatpush1.msra.mxu0 %v1323
    %1378 = vmatprep.subr.mxu0 0.0
    %1379 = vmatpush1.msra.mxu0 %v1322
    %1380 = vmatprep.subr.mxu0 0.0
    %1381 = vmatpush1.msra.mxu0 %v1321
    %1382 = vmatprep.subr.mxu0 0.0
    %1383 = vmatpush1.msra.mxu0 %v1320
    %1384 = vmatprep.subr.mxu0 0.0
    %1385 = vmatpush1.msra.mxu0 %v1319
    %1386 = vmatprep.subr.mxu0 0.0
    %1387 = vmatpush1.msra.mxu0 %v1318
    %1388 = vmatprep.subr.mxu0 0.0
    %1389 = vmatpush1.msra.mxu0 %v1317
    %1390 = vmatprep.subr.mxu0 0.0
    %1391 = vmatpush1.msra.mxu0 %v1316
    %1392 = vmatprep.subr.mxu0 0.0
    %1393 = vmatpush1.msra.mxu0 %v1315
    %1394 = vmatprep.subr.mxu0 0.0
    %1395 = vmatpush1.msra.mxu0 %v1314
    %1396 = vmatprep.subr.mxu0 0.0
    %1397 = vmatpush2.msra.mxu0 %v1345
    %1398 = vmatprep.subr.mxu0 0.0
    %1399 = vmatpush2.msra.mxu0 %v1344
    %1400 = vmatprep.subr.mxu0 0.0
    %1401 = vmatpush2.msra.mxu0 %v1343
    %1402 = vmatprep.subr.mxu0 0.0
    %1403 = vmatpush2.msra.mxu0 %v1342
    %1404 = vmatprep.subr.mxu0 0.0
    %1405 = vmatpush2.msra.mxu0 %v1341
    %1406 = vmatprep.subr.mxu0 0.0
    %1407 = vmatpush2.msra.mxu0 %v1340
    %1408 = vmatprep.subr.mxu0 0.0
    %1409 = vmatpush2.msra.mxu0 %v1339
    %1410 = vmatprep.subr.mxu0 0.0
    %1411 = vmatpush2.msra.mxu0 %v1338
    %1412 = vmatprep.subr.mxu0 0.0
    %1413 = vmatpush2.msra.mxu0 %v1337
    %1414 = vmatprep.subr.mxu0 0.0
    %1415 = vmatpush2.msra.mxu0 %v1336
    %1416 = vmatprep.subr.mxu0 0.0
    %1417 = vmatpush2.msra.mxu0 %v1335
    %1418 = vmatprep.subr.mxu0 0.0
    %1419 = vmatpush2.msra.mxu0 %v1334
    %1420 = vmatprep.subr.mxu0 0.0
    %1421 = vmatpush2.msra.mxu0 %v1333
    %1422 = vmatprep.subr.mxu0 0.0
    %1423 = vmatpush2.msra.mxu0 %v1332
    %1424 = vmatprep.subr.mxu0 0.0
    %1425 = vmatpush2.msra.mxu0 %v1331
    %1426 = vmatprep.subr.mxu0 0.0
    %1427 = vmatpush2.msra.mxu0 %v1330
    %1428 = vmatprep.mubr.f32.mxu0 %v1361
    %1429 = vmatmul.mubr.f32.gmra.mxu0 %v1360
    %v1430 = vpop.f32.mrf.mxu0
    %v1431 = vadd.f32 %v1351, %v1430
    %v1432 = vpop.f32.mrf.mxu0
    %1433 = vdwg.mxu0
    %1434 = vst [vmem:[#allocation2 + $0x8] sm:$0x3] %v1431
    %v1435 = vld [vmem:[#allocation2] sm:$0xff]
    %v1436 = vld [vmem:[#allocation2 + $0x8] sm:$0xff]
    %v1437 = vld [vmem:[#allocation14] sm:$0xff]
    %v1438 = vld [vmem:[#allocation14 + $0x8] sm:$0xff]
    %v1439 = vld [vmem:[#allocation14 + $0x10] sm:$0xff]
    %v1440 = vld [vmem:[#allocation14 + $0x18] sm:$0xff]
    %v1441 = vld [vmem:[#allocation14 + $0x20] sm:$0xff]
    %v1442 = vld [vmem:[#allocation14 + $0x28] sm:$0xff]
    %v1443 = vld [vmem:[#allocation14 + $0x30] sm:$0xff]
    %v1444 = vld [vmem:[#allocation14 + $0x38] sm:$0xff]
    %v1445 = vld [vmem:[#allocation14 + $0x40] sm:$0xff]
    %v1446 = vld [vmem:[#allocation14 + $0x48] sm:$0xff]
    %v1447 = vld [vmem:[#allocation14 + $0x50] sm:$0xff]
    %v1448 = vld [vmem:[#allocation14 + $0x58] sm:$0xff]
    %v1449 = vld [vmem:[#allocation14 + $0x60] sm:$0xff]
    %v1450 = vld [vmem:[#allocation14 + $0x68] sm:$0xff]
    %v1451 = vld [vmem:[#allocation14 + $0x70] sm:$0xff]
    %v1452 = vld [vmem:[#allocation14 + $0x78] sm:$0xff]
    %v1453 = vld [vmem:[%s9] sm:$0x1]
    %v1455 = vlaneseq
    %v1456 = vshrl.u32 %v1455, 7
    %v1457 = vsub.s32 0, %v1456
    %v1458 = vrot.slane %v1453, %v1457
    %1460 = vmatprep.subr.mxu0 0.0
    %1461 = vmatpush1.msra.mxu0 %v1452
    %1462 = vmatprep.subr.mxu0 0.0
    %1463 = vmatpush1.msra.mxu0 %v1451
    %1464 = vmatprep.subr.mxu0 0.0
    %1465 = vmatpush1.msra.mxu0 %v1450
    %1466 = vmatprep.subr.mxu0 0.0
    %1467 = vmatpush1.msra.mxu0 %v1449
    %1468 = vmatprep.subr.mxu0 0.0
    %1469 = vmatpush1.msra.mxu0 %v1448
    %1470 = vmatprep.subr.mxu0 0.0
    %1471 = vmatpush1.msra.mxu0 %v1447
    %1472 = vmatprep.subr.mxu0 0.0
    %1473 = vmatpush1.msra.mxu0 %v1446
    %1474 = vmatprep.subr.mxu0 0.0
    %1475 = vmatpush1.msra.mxu0 %v1445
    %1476 = vmatprep.subr.mxu0 0.0
    %1477 = vmatpush1.msra.mxu0 %v1444
    %1478 = vmatprep.subr.mxu0 0.0
    %1479 = vmatpush1.msra.mxu0 %v1443
    %1480 = vmatprep.subr.mxu0 0.0
    %1481 = vmatpush1.msra.mxu0 %v1442
    %1482 = vmatprep.subr.mxu0 0.0
    %1483 = vmatpush1.msra.mxu0 %v1441
    %1484 = vmatprep.subr.mxu0 0.0
    %1485 = vmatpush1.msra.mxu0 %v1440
    %1486 = vmatprep.subr.mxu0 0.0
    %1487 = vmatpush1.msra.mxu0 %v1439
    %1488 = vmatprep.subr.mxu0 0.0
    %1489 = vmatpush1.msra.mxu0 %v1438
    %1490 = vmatprep.subr.mxu0 0.0
    %1491 = vmatpush1.msra.mxu0 %v1437
    %1492 = vmatprep.subr.mxu0 0.0
    %1493 = vmatpush2.msra.mxu0 0.0
    %1494 = vmatprep.subr.mxu0 0.0
    %1495 = vmatpush2.msra.mxu0 0.0
    %1496 = vmatprep.subr.mxu0 0.0
    %1497 = vmatpush2.msra.mxu0 0.0
    %1498 = vmatprep.subr.mxu0 0.0
    %1499 = vmatpush2.msra.mxu0 0.0
    %1500 = vmatprep.subr.mxu0 0.0
    %1501 = vmatpush2.msra.mxu0 0.0
    %1502 = vmatprep.subr.mxu0 0.0
    %1503 = vmatpush2.msra.mxu0 0.0
    %1504 = vmatprep.subr.mxu0 0.0
    %1505 = vmatpush2.msra.mxu0 0.0
    %1506 = vmatprep.subr.mxu0 0.0
    %1507 = vmatpush2.msra.mxu0 0.0
    %1508 = vmatprep.subr.mxu0 0.0
    %1509 = vmatpush2.msra.mxu0 0.0
    %1510 = vmatprep.subr.mxu0 0.0
    %1511 = vmatpush2.msra.mxu0 0.0
    %1512 = vmatprep.subr.mxu0 0.0
    %1513 = vmatpush2.msra.mxu0 0.0
    %1514 = vmatprep.subr.mxu0 0.0
    %1515 = vmatpush2.msra.mxu0 0.0
    %1516 = vmatprep.subr.mxu0 0.0
    %1517 = vmatpush2.msra.mxu0 0.0
    %1518 = vmatprep.subr.mxu0 0.0
    %1519 = vmatpush2.msra.mxu0 0.0
    %1520 = vmatprep.subr.mxu0 0.0
    %1521 = vmatpush2.msra.mxu0 0.0
    %1522 = vmatprep.subr.mxu0 0.0
    %1523 = vmatpush2.msra.mxu0 0.0
    %1524 = vmatprep.mubr.f32.mxu0 0.0
    %1525 = vmatmul.mubr.f32.gmra.mxu0 %v1435
    %v1526 = vpop.f32.mrf.mxu0
    %v1527 = vadd.f32 %v1458, %v1526
    %v1528 = vpop.f32.mrf.mxu0
    %1529 = vmatprep.mubr.f32.mxu0 0.0
    %1530 = vmatmul.mubr.f32.gmra.mxu0 %v1436
    %v1531 = vpop.f32.mrf.mxu0
    %v1532 = vadd.f32 %v1458, %v1531
    %v1533 = vpop.f32.mrf.mxu0
    %1534 = vdwg.mxu0
    %v1535 = vmul.f32 %v1527, 0.5
    %v1536 = vmul.f32 %v1532, 0.5
    %v1537 = vmul.f32 %v1527, 0.70710677
    %v1538 = vmul.f32 %v1532, 0.70710677
    %vm1539 = vcmp.ge.f32.partialorder %v1537, 0.0
    %vm1540 = vcmp.ge.f32.partialorder %v1538, 0.0
    %v1541 = vsel %vm1539, 1.0, -1.0
    %v1542 = vsel %vm1540, 1.0, -1.0
    %v1543 = vmul.f32 %v1537, %v1541
    %v1544 = vmul.f32 %v1538, %v1542
    %v1545 = vmul.f32 %v1543, 0.3275911
    %v1546 = vmul.f32 %v1544, 0.3275911
    %v1547 = vadd.f32 %v1545, 1.0
    %v1548 = vadd.f32 %v1546, 1.0
    %v1549 = vrcp.pop %v1547
    %v1550 = vmul.f32 1.0, %v1549
    %v1551 = vrcp.pop %v1548
    %v1552 = vmul.f32 1.0, %v1551
    %v1553 = vmul.f32 %v1550, 1.0614054
    %v1554 = vmul.f32 %v1552, 1.0614054
    %v1555 = vadd.f32 %v1553, -1.4531521
    %v1556 = vadd.f32 %v1554, -1.4531521
    %v1557 = vmul.f32 %v1555, %v1550
    %v1558 = vmul.f32 %v1556, %v1552
    %v1559 = vadd.f32 %v1557, 1.4214138
    %v1560 = vadd.f32 %v1558, 1.4214138
    %v1561 = vmul.f32 %v1559, %v1550
    %v1562 = vmul.f32 %v1560, %v1552
    %v1563 = vadd.f32 %v1561, -0.28449672
    %v1564 = vadd.f32 %v1562, -0.28449672
    %v1565 = vmul.f32 %v1563, %v1550
    %v1566 = vmul.f32 %v1564, %v1552
    %v1567 = vadd.f32 %v1565, 0.2548296
    %v1568 = vadd.f32 %v1566, 0.2548296
    %v1569 = vmul.f32 %v1567, %v1550
    %v1570 = vmul.f32 %v1568, %v1552
    %v1571 = vsub.f32 0.0, %v1543
    %v1572 = vsub.f32 0.0, %v1544
    %v1573 = vmul.f32 %v1571, %v1543
    %v1574 = vmul.f32 %v1572, %v1544
    %v1575 = vmul.f32 %v1573, 1.442695
    %v1576 = vpow.pop %v1575
    %v1577 = vmul.f32 %v1574, 1.442695
    %v1578 = vpow.pop %v1577
    %v1579 = vmul.f32 %v1569, %v1576
    %v1580 = vmul.f32 %v1570, %v1578
    %v1581 = vsub.f32 1.0, %v1579
    %v1582 = vsub.f32 1.0, %v1580
    %v1583 = vmul.f32 %v1541, %v1581
    %v1584 = vmul.f32 %v1542, %v1582
    %v1585 = vadd.f32 %v1583, 1.0
    %v1586 = vadd.f32 %v1584, 1.0
    %v1587 = vmul.f32 %v1535, %v1585
    %v1588 = vmul.f32 %v1536, %v1586
    %v1589 = vld [vmem:[#allocation15] sm:$0xff]
    %v1590 = vld [vmem:[#allocation15 + $0x8] sm:$0xff]
    %v1591 = vld [vmem:[#allocation15 + $0x10] sm:$0xff]
    %v1592 = vld [vmem:[#allocation15 + $0x18] sm:$0xff]
    %v1593 = vld [vmem:[#allocation15 + $0x20] sm:$0xff]
    %v1594 = vld [vmem:[#allocation15 + $0x28] sm:$0xff]
    %v1595 = vld [vmem:[#allocation15 + $0x30] sm:$0xff]
    %v1596 = vld [vmem:[#allocation15 + $0x38] sm:$0xff]
    %v1597 = vld [vmem:[#allocation15 + $0x40] sm:$0xff]
    %v1598 = vld [vmem:[#allocation15 + $0x48] sm:$0xff]
    %v1599 = vld [vmem:[#allocation15 + $0x50] sm:$0xff]
    %v1600 = vld [vmem:[#allocation15 + $0x58] sm:$0xff]
    %v1601 = vld [vmem:[#allocation15 + $0x60] sm:$0xff]
    %v1602 = vld [vmem:[#allocation15 + $0x68] sm:$0xff]
    %v1603 = vld [vmem:[#allocation15 + $0x70] sm:$0xff]
    %v1604 = vld [vmem:[#allocation15 + $0x78] sm:$0xff]
    %v1605 = vld [vmem:[%s11] sm:$0x1]
    %v1607 = vlaneseq
    %v1608 = vshrl.u32 %v1607, 7
    %v1609 = vsub.s32 0, %v1608
    %v1610 = vrot.slane %v1605, %v1609
    %1612 = vmatprep.subr.mxu0 0.0
    %1613 = vmatpush1.msra.mxu0 %v1604
    %1614 = vmatprep.subr.mxu0 0.0
    %1615 = vmatpush1.msra.mxu0 %v1603
    %1616 = vmatprep.subr.mxu0 0.0
    %1617 = vmatpush1.msra.mxu0 %v1602
    %1618 = vmatprep.subr.mxu0 0.0
    %1619 = vmatpush1.msra.mxu0 %v1601
    %1620 = vmatprep.subr.mxu0 0.0
    %1621 = vmatpush1.msra.mxu0 %v1600
    %1622 = vmatprep.subr.mxu0 0.0
    %1623 = vmatpush1.msra.mxu0 %v1599
    %1624 = vmatprep.subr.mxu0 0.0
    %1625 = vmatpush1.msra.mxu0 %v1598
    %1626 = vmatprep.subr.mxu0 0.0
    %1627 = vmatpush1.msra.mxu0 %v1597
    %1628 = vmatprep.subr.mxu0 0.0
    %1629 = vmatpush1.msra.mxu0 %v1596
    %1630 = vmatprep.subr.mxu0 0.0
    %1631 = vmatpush1.msra.mxu0 %v1595
    %1632 = vmatprep.subr.mxu0 0.0
    %1633 = vmatpush1.msra.mxu0 %v1594
    %1634 = vmatprep.subr.mxu0 0.0
    %1635 = vmatpush1.msra.mxu0 %v1593
    %1636 = vmatprep.subr.mxu0 0.0
    %1637 = vmatpush1.msra.mxu0 %v1592
    %1638 = vmatprep.subr.mxu0 0.0
    %1639 = vmatpush1.msra.mxu0 %v1591
    %1640 = vmatprep.subr.mxu0 0.0
    %1641 = vmatpush1.msra.mxu0 %v1590
    %1642 = vmatprep.subr.mxu0 0.0
    %1643 = vmatpush1.msra.mxu0 %v1589
    %1644 = vmatprep.subr.mxu0 0.0
    %1645 = vmatpush2.msra.mxu0 0.0
    %1646 = vmatprep.subr.mxu0 0.0
    %1647 = vmatpush2.msra.mxu0 0.0
    %1648 = vmatprep.subr.mxu0 0.0
    %1649 = vmatpush2.msra.mxu0 0.0
    %1650 = vmatprep.subr.mxu0 0.0
    %1651 = vmatpush2.msra.mxu0 0.0
    %1652 = vmatprep.subr.mxu0 0.0
    %1653 = vmatpush2.msra.mxu0 0.0
    %1654 = vmatprep.subr.mxu0 0.0
    %1655 = vmatpush2.msra.mxu0 0.0
    %1656 = vmatprep.subr.mxu0 0.0
    %1657 = vmatpush2.msra.mxu0 0.0
    %1658 = vmatprep.subr.mxu0 0.0
    %1659 = vmatpush2.msra.mxu0 0.0
    %1660 = vmatprep.subr.mxu0 0.0
    %1661 = vmatpush2.msra.mxu0 0.0
    %1662 = vmatprep.subr.mxu0 0.0
    %1663 = vmatpush2.msra.mxu0 0.0
    %1664 = vmatprep.subr.mxu0 0.0
    %1665 = vmatpush2.msra.mxu0 0.0
    %1666 = vmatprep.subr.mxu0 0.0
    %1667 = vmatpush2.msra.mxu0 0.0
    %1668 = vmatprep.subr.mxu0 0.0
    %1669 = vmatpush2.msra.mxu0 0.0
    %1670 = vmatprep.subr.mxu0 0.0
    %1671 = vmatpush2.msra.mxu0 0.0
    %1672 = vmatprep.subr.mxu0 0.0
    %1673 = vmatpush2.msra.mxu0 0.0
    %1674 = vmatprep.subr.mxu0 0.0
    %1675 = vmatpush2.msra.mxu0 0.0
    %1676 = vmatprep.mubr.f32.mxu0 0.0
    %1677 = vmatmul.mubr.f32.gmra.mxu0 %v1587
    %v1678 = vpop.f32.mrf.mxu0
    %v1679 = vadd.f32 %v1610, %v1678
    %v1680 = vpop.f32.mrf.mxu0
    %1681 = vmatprep.mubr.f32.mxu0 0.0
    %1682 = vmatmul.mubr.f32.gmra.mxu0 %v1588
    %v1683 = vpop.f32.mrf.mxu0
    %v1684 = vadd.f32 %v1610, %v1683
    %v1685 = vpop.f32.mrf.mxu0
    %1686 = vdwg.mxu0
    %1687 = vst [vmem:[#allocation17] sm:$0xff] %v1679
    %1688 = vst [vmem:[#allocation17 + $0x8] sm:$0xff] %v1684
    // Predicated region
    $region82: #{tpu_custom_call.1} parent=1 // pred_check
      _
    $region83: #{tpu_custom_call.1} parent=1 // pred_check_branch
      %1690 = sbr.rel (0) target = $region85
    $region84: #{tpu_custom_call.1} parent=1 // pred_region
      %s1692 = ssub.s32 256, 256
      %1693 = vsyncadd [#allocation5], %s1692
      %s1694 = sshll.u32 [#allocation17], 4
      %s1695 = int_to_ptr.vmem [resolvable:$true] %s1694
      %1700 = dma.vmem_to_hbm [thread:$0]  %s1695, 256, %s12, [#allocation5], 128, 128, 8
    $region85: #{tpu_custom_call.1} parent=1 // pred_fallthru
      _
    // Predicated region
    $region86: #{tpu_custom_call.1} parent=1 // pred_check
      _
    $region87: #{tpu_custom_call.1} parent=1 // pred_check_branch
      %1702 = sbr.rel (0) target = $region89
    $region88: #{tpu_custom_call.1} parent=1 // pred_region
      %1703 = dma.done [#allocation5], 256
    $region89: #{tpu_custom_call.1} parent=1 // pred_fallthru
      _
    %1704 = vsyncpa [#allocation4], 1
    %1705 = vsyncpa [#allocation7], 1
    %1706 = vsyncpa [#allocation10], 1
    %1707 = vsyncpa [#allocation13], 1
    %1708 = vsyncpa [#allocation16], 1
    %1709 = vsyncpa [#allocation5], 1

</llo_original>
